<compile_context>
chip_gen: v5e
topology: v5e:2x2
jax: 0.10.0
libtpu: 0.0.40
codegen_flags: <defaults>
</compile_context>

<pallas_src>
import functools

import jax
import jax.numpy as jnp
from jax.experimental import pallas as pl
from jax.experimental.pallas import tpu as pltpu

# ---- static model hyper-parameters (match the PyTorch __init__) -------------
N_FEATURES = 5
K_PAD = 8               # feature dim zero-padded for an aligned MXU K
ACTION_DIM = 5
N_Q_NETS = 2
PERC_HIDDEN = 64
PERC_OUT = 128          # q-net input dim (MLP(128, ...))
MLP_HIDDEN = 256        # hidden_dims=[256, 256]
OUT_PAD = 128           # lane-dense padded width of the q-head output
TILE_B_CAP = 256        # max batch rows per grid step

# ---- example problem size ----------------------------------------------------
BATCH = 32
N_VEHICLES = 8          # entities per observation


def _elu(x):
    # ELU(alpha=1).  Clamp the exp argument so the unselected branch stays finite.
    return jnp.where(x > 0, x, jnp.exp(jnp.minimum(x, 0.0)) - 1.0)


def _round_up(x, m):
    return ((x + m - 1) // m) * m


def _cdiv(a, b):
    return (a + b - 1) // b


def _critic_kernel(tile_b, n_entities, chunk_b, compute_dtype,
                   obs_ref,                       # (tile_b * N, K_PAD) f32
                   pw1_ref, pb1_ref,              # (8, 64) cdtype, (1, 64) f32
                   pw2_ref, pb2_ref,              # (64, 128) cdtype, (1, 128) f32
                   qw1_ref, qb1_ref,              # (128, nq*256) [1/N folded], (1, nq*256)
                   qw2_ref, qb2_ref,              # (nq, 256, 256), (nq, 1, 256)
                   qw3_ref, qb3_ref,              # (nq, 256, 128) [dueling folded, col-padded]
                   out_ref,                       # (tile_b, 128); lanes >= A are padding
                   h_ref):                        # VMEM scratch (tile_b, 128) f32
    rows_c = chunk_b * n_entities
    n_chunks = tile_b // chunk_b

    pw1 = pw1_ref[...]
    pb1 = pb1_ref[...]
    pw2 = pw2_ref[...]
    pb2 = pb2_ref[...]

    # --- perception stage, chunked so h1/h2 stay vreg-resident ---------------
    def perception_chunk(c):
        r0 = c * rows_c
        b0 = c * chunk_b
        if not isinstance(c, int):
            r0 = pl.multiple_of(r0, 8)
            b0 = pl.multiple_of(b0, 8)
        x = obs_ref[pl.ds(r0, rows_c), :].astype(compute_dtype)       # (rows_c, 8)
        h1 = _elu(jnp.dot(x, pw1, preferred_element_type=jnp.float32) + pb1)
        h2 = _elu(jnp.dot(h1.astype(compute_dtype), pw2,
                          preferred_element_type=jnp.float32) + pb2)  # (rows_c, 128)
        # entity sum-pool (the 1/N of the mean is folded into qw1)
        h_ref[pl.ds(b0, chunk_b), :] = jnp.sum(
            h2.reshape(chunk_b, n_entities, PERC_OUT), axis=1)

    if n_chunks == 1:
        perception_chunk(0)
    else:
        def body(c, carry):
            perception_chunk(c)
            return carry
        jax.lax.fori_loop(0, n_chunks, body, 0)

    # --- fused first layer of both q-nets (one wide matmul) ------------------
    h = h_ref[...].astype(compute_dtype)                              # (tile_b, 128)
    z1 = _elu(jnp.dot(h, qw1_ref[...],
                      preferred_element_type=jnp.float32) + qb1_ref[...])

    # --- per-net layers 2/3; dueling head already folded into qw3/qb3 --------
    q_min = None
    for q in range(N_Q_NETS):                                         # static (nq = 2)
        z1q = z1[:, q * MLP_HIDDEN:(q + 1) * MLP_HIDDEN].astype(compute_dtype)
        z2 = _elu(jnp.dot(z1q, qw2_ref[q],
                          preferred_element_type=jnp.float32) + qb2_ref[q])
        z3 = jnp.dot(z2.astype(compute_dtype), qw3_ref[q],
                     preferred_element_type=jnp.float32) + qb3_ref[q]  # (tile_b, 128)
        q_min = z3 if q_min is None else jnp.minimum(q_min, z3)       # Q-values directly

    out_ref[...] = q_min.astype(out_ref.dtype)                        # lane-dense store


def init_params(key):
    ks = jax.random.split(key, 10)

    def w(k, shape, fan_in):
        return (jax.random.normal(k, shape, jnp.float32) *
                (1.0 / jnp.sqrt(float(fan_in)))).astype(jnp.float32)

    def b(k, shape):
        return (0.01 * jax.random.normal(k, shape, jnp.float32)).astype(jnp.float32)

    return dict(
        pw1=w(ks[0], (N_FEATURES, PERC_HIDDEN), N_FEATURES),
        pb1=b(ks[1], (1, PERC_HIDDEN)),
        pw2=w(ks[2], (PERC_HIDDEN, PERC_OUT), PERC_HIDDEN),
        pb2=b(ks[3], (1, PERC_OUT)),
        qw1=w(ks[4], (N_Q_NETS, PERC_OUT, MLP_HIDDEN), PERC_OUT),
        qb1=b(ks[5], (N_Q_NETS, 1, MLP_HIDDEN)),
        qw2=w(ks[6], (N_Q_NETS, MLP_HIDDEN, MLP_HIDDEN), MLP_HIDDEN),
        qb2=b(ks[7], (N_Q_NETS, 1, MLP_HIDDEN)),
        qw3=w(ks[8], (N_Q_NETS, MLP_HIDDEN, ACTION_DIM + 1), MLP_HIDDEN),
        qb3=b(ks[9], (N_Q_NETS, 1, ACTION_DIM + 1)),
    )


def _pack_params(params, n_entities, compute_dtype):
    """Fuse / fold / pad weights for the kernel layout.

    - pw1: K zero-padded 5 -> 8 for the MXU.
    - qw1/qb1: the two q-nets' first layers concatenated (one wide matmul),
      with the 1/N of the entity mean-pool folded into qw1.
    - qw3/qb3: dueling head folded in (Q[:,a] = z3[:,a] - mean_a' z3[:,a'] + z3[:,A])
      and zero-padded to 128 output lanes (lane-dense last matmul + store).
    Weights are cast to compute_dtype (bf16 fast path); biases stay f32.
    """
    f32 = jnp.float32
    inv_n = 1.0 / float(n_entities)

    pw1 = jnp.pad(params["pw1"].astype(f32),
                  ((0, K_PAD - N_FEATURES), (0, 0))).astype(compute_dtype)
    pw2 = params["pw2"].astype(compute_dtype)

    qw1 = (jnp.concatenate([params["qw1"][q] for q in range(N_Q_NETS)], axis=1)
           * inv_n).astype(compute_dtype)                              # (128, nq*256)
    qb1 = jnp.concatenate([params["qb1"][q] for q in range(N_Q_NETS)],
                          axis=1).astype(f32)                          # (1, nq*256)

    qw2 = params["qw2"].astype(compute_dtype)

    w3 = params["qw3"].astype(f32)                                     # (nq, 256, A+1)
    b3 = params["qb3"].astype(f32)                                     # (nq, 1, A+1)
    w3a, w3v = w3[..., :ACTION_DIM], w3[..., ACTION_DIM:]
    b3a, b3v = b3[..., :ACTION_DIM], b3[..., ACTION_DIM:]
    w3q = w3a - jnp.mean(w3a, axis=-1, keepdims=True) + w3v            # dueling fold
    b3q = b3a - jnp.mean(b3a, axis=-1, keepdims=True) + b3v
    pad = OUT_PAD - ACTION_DIM
    qw3 = jnp.pad(w3q, ((0, 0), (0, 0), (0, pad))).astype(compute_dtype)
    qb3 = jnp.pad(b3q, ((0, 0), (0, 0), (0, pad))).astype(f32)

    return dict(pw1=pw1, pb1=params["pb1"].astype(f32),
                pw2=pw2, pb2=params["pb2"].astype(f32),
                qw1=qw1, qb1=qb1,
                qw2=qw2, qb2=params["qb2"].astype(f32),
                qw3=qw3, qb3=qb3)


def _const_spec(shape):
    zeros = (0,) * len(shape)
    return pl.BlockSpec(shape, lambda i: zeros)


def highway_discrete_critic_forward(obs, params, *, use_bf16=True,
                                    num_tensorcores=None):
    """Equivalent of HighwayDiscreteCritic.forward(obs, return_q_min=True,
    use_target_net=False).  obs: (B, N*F) or (B, N, F) float32."""
    B = obs.shape[0]
    obs3 = obs.reshape(B, -1, N_FEATURES).astype(jnp.float32)
    N = obs3.shape[1]

    if num_tensorcores is None:
        try:
            kind = jax.devices()[0].device_kind.lower()
        except Exception:
            kind = ""
        num_tensorcores = 2 if ("v7" in kind or "tpu7" in kind) else 1

    compute_dtype = jnp.bfloat16 if use_bf16 else jnp.float32
    out_dtype = jnp.bfloat16 if use_bf16 else jnp.float32

    # Per-chunk batch rows for the in-kernel perception loop: ~128 entity rows
    # so the (rows, 64)/(rows, 128) intermediates stay vreg-resident.
    chunk_b = max(8, ((128 // max(N, 1)) // 8) * 8)
    chunk_b = min(chunk_b, _round_up(B, 8))

    tile_b = _round_up(min(TILE_B_CAP, _round_up(B, chunk_b)), chunk_b)
    if num_tensorcores > 1 and B > chunk_b:
        # keep >= num_tensorcores steps on the "parallel" grid axis (megacore)
        tile_b = min(tile_b, _round_up(_cdiv(B, num_tensorcores), chunk_b))
    grid_b = _cdiv(B, tile_b)

    # Entity-major rows; feature dim zero-padded 5 -> 8 (aligned MXU K).
    # No batch padding: Pallas masks the partial final obs block; padded batch
    # rows only produce garbage in output rows that are sliced off below.
    obs_flat = jnp.pad(obs3.reshape(B * N, N_FEATURES),
                       ((0, 0), (0, K_PAD - N_FEATURES)))

    p = _pack_params(params, N, compute_dtype)
    args = (obs_flat, p["pw1"], p["pb1"], p["pw2"], p["pb2"],
            p["qw1"], p["qb1"], p["qw2"], p["qb2"], p["qw3"], p["qb3"])

    rows = tile_b * N
    in_specs = [pl.BlockSpec((rows, K_PAD), lambda i: (i, 0))] + \
               [_const_spec(a.shape) for a in args[1:]]
    out_spec = pl.BlockSpec((tile_b, OUT_PAD), lambda i: (i, 0))

    kernel = functools.partial(_critic_kernel, tile_b, N, chunk_b, compute_dtype)
    out_padded = pl.pallas_call(
        kernel,
        grid=(grid_b,),
        in_specs=in_specs,
        out_specs=out_spec,
        out_shape=jax.ShapeDtypeStruct((grid_b * tile_b, OUT_PAD), out_dtype),
        scratch_shapes=[pltpu.VMEM((tile_b, PERC_OUT), jnp.float32)],
        compiler_params=pltpu.CompilerParams(
            dimension_semantics=("parallel",)),
    )(*args)

    # Strip batch padding and the lane padding of the q head.
    return out_padded[:B, :ACTION_DIM].astype(jnp.float32)


def _reference_forward(obs, params):
    """Pure-JAX reference matching the PyTorch forward (return_q_min=True)."""
    hp = jax.lax.Precision.HIGHEST
    B = obs.shape[0]
    obs3 = obs.reshape(B, -1, N_FEATURES).astype(jnp.float32)
    h1 = _elu(jnp.einsum("bnf,fk->bnk", obs3, params["pw1"], precision=hp)
              + params["pb1"])
    h2 = _elu(jnp.einsum("bnk,kd->bnd", h1, params["pw2"], precision=hp)
              + params["pb2"])
    h = jnp.mean(h2, axis=1)                                           # (B, 128)
    qs = []
    for q in range(N_Q_NETS):
        z1 = _elu(jnp.dot(h, params["qw1"][q], precision=hp) + params["qb1"][q])
        z2 = _elu(jnp.dot(z1, params["qw2"][q], precision=hp) + params["qb2"][q])
        z3 = jnp.dot(z2, params["qw3"][q], precision=hp) + params["qb3"][q]
        a = z3[:, :ACTION_DIM]
        a = a - jnp.mean(a, axis=-1, keepdims=True)
        qs.append(a + z3[:, ACTION_DIM:])
    return jnp.minimum(qs[0], qs[1])


if __name__ == "__main__":
    key = jax.random.PRNGKey(0)
    k_param, k_obs = jax.random.split(key)

    params = init_params(k_param)
    obs = jax.random.normal(k_obs, (BATCH, N_VEHICLES * N_FEATURES), jnp.float32)

    q_ref = _reference_forward(obs, params)

    # Exact-parity path (f32 MXU operands) against the pure-JAX reference.
    q_f32 = highway_discrete_critic_forward(obs, params, use_bf16=False)
    jax.block_until_ready(q_f32)
    assert q_f32.shape == (BATCH, ACTION_DIM), q_f32.shape
    assert bool(jnp.allclose(q_f32, q_ref, rtol=1e-2, atol=1e-2))

    # Fast path (bf16 MXU operands, f32 accumulation, bf16 writeback).
    q_min = highway_discrete_critic_forward(obs, params, use_bf16=True)
    jax.block_until_ready(q_min)
    assert q_min.shape == (BATCH, ACTION_DIM), q_min.shape
    assert q_min.dtype == jnp.float32
    assert bool(jnp.all(jnp.isfinite(q_min)))
    assert bool(jnp.allclose(q_min, q_ref, rtol=0.1, atol=0.1))

    print("KERNEL_OK")
</pallas_src>

<mosaic_0001>
module attributes {stable_mosaic.version = 11 : i64} {
  func.func @_critic_kernel(%arg0: i32, %arg1: memref<256x8xf32, #tpu.memory_space<vmem>>, %arg2: memref<8x64xf32, #tpu.memory_space<vmem>>, %arg3: memref<1x64xf32, #tpu.memory_space<vmem>>, %arg4: memref<64x128xf32, #tpu.memory_space<vmem>>, %arg5: memref<1x128xf32, #tpu.memory_space<vmem>>, %arg6: memref<128x512xf32, #tpu.memory_space<vmem>>, %arg7: memref<1x512xf32, #tpu.memory_space<vmem>>, %arg8: memref<2x256x256xf32, #tpu.memory_space<vmem>>, %arg9: memref<2x1x256xf32, #tpu.memory_space<vmem>>, %arg10: memref<2x256x128xf32, #tpu.memory_space<vmem>>, %arg11: memref<2x1x128xf32, #tpu.memory_space<vmem>>, %arg12: memref<32x128xf32, #tpu.memory_space<vmem>>, %arg13: memref<32x128xf32, #tpu.memory_space<vmem>>) attributes {dimension_semantics = [#tpu.dimension_semantics<parallel>], iteration_bounds = array<i64: 1>, scalar_prefetch = 0 : i64, scratch_operands = 1 : i64, tpu.core_type = #tpu.core_type<tc>, window_params = [{transform_indices = @transform_0, window_bounds = array<i64: 256, 8>}, {pipeline_mode = #tpu.pipeline_mode<synchronous>, transform_indices = @transform_1, window_bounds = array<i64: 8, 64>}, {pipeline_mode = #tpu.pipeline_mode<synchronous>, transform_indices = @transform_2, window_bounds = array<i64: 1, 64>}, {pipeline_mode = #tpu.pipeline_mode<synchronous>, transform_indices = @transform_3, window_bounds = array<i64: 64, 128>}, {pipeline_mode = #tpu.pipeline_mode<synchronous>, transform_indices = @transform_4, window_bounds = array<i64: 1, 128>}, {pipeline_mode = #tpu.pipeline_mode<synchronous>, transform_indices = @transform_5, window_bounds = array<i64: 128, 512>}, {pipeline_mode = #tpu.pipeline_mode<synchronous>, transform_indices = @transform_6, window_bounds = array<i64: 1, 512>}, {pipeline_mode = #tpu.pipeline_mode<synchronous>, transform_indices = @transform_7, window_bounds = array<i64: 2, 256, 256>}, {pipeline_mode = #tpu.pipeline_mode<synchronous>, transform_indices = @transform_8, window_bounds = array<i64: 2, 1, 256>}, {pipeline_mode = #tpu.pipeline_mode<synchronous>, transform_indices = @transform_9, window_bounds = array<i64: 2, 256, 128>}, {pipeline_mode = #tpu.pipeline_mode<synchronous>, transform_indices = @transform_10, window_bounds = array<i64: 2, 1, 128>}, {transform_indices = @transform_11, window_bounds = array<i64: 32, 128>}]} {
    %c0 = arith.constant 0 : index
    %c0_0 = arith.constant 0 : index
    %0 = vector.load %arg2[%c0, %c0_0] : memref<8x64xf32, #tpu.memory_space<vmem>>, vector<8x64xf32>
    %c0_1 = arith.constant 0 : index
    %c0_2 = arith.constant 0 : index
    %1 = vector.load %arg3[%c0_1, %c0_2] : memref<1x64xf32, #tpu.memory_space<vmem>>, vector<1x64xf32>
    %c0_3 = arith.constant 0 : index
    %c0_4 = arith.constant 0 : index
    %2 = vector.load %arg4[%c0_3, %c0_4] : memref<64x128xf32, #tpu.memory_space<vmem>>, vector<64x128xf32>
    %c0_5 = arith.constant 0 : index
    %c0_6 = arith.constant 0 : index
    %3 = vector.load %arg5[%c0_5, %c0_6] : memref<1x128xf32, #tpu.memory_space<vmem>>, vector<1x128xf32>
    %c0_i32 = arith.constant 0 : i32
    %c2_i32 = arith.constant 2 : i32
    %4 = arith.addi %c0_i32, %c2_i32 : i32
    %c1_i32 = arith.constant 1 : i32
    scf.for %arg14 = %c0_i32 to %4 step %c1_i32  : i32 {
      %c128_i32 = arith.constant 128 : i32
      %67 = arith.muli %arg14, %c128_i32 : i32
      %c16_i32 = arith.constant 16 : i32
      %68 = arith.muli %arg14, %c16_i32 : i32
      %69 = tpu.assume_multiple %67, 8 : i32
      %70 = tpu.assume_multiple %68, 8 : i32
      %71 = arith.index_cast %69 : i32 to index
      %c0_52 = arith.constant 0 : index
      %72 = vector.load %arg1[%71, %c0_52] : memref<256x8xf32, #tpu.memory_space<vmem>>, vector<128x8xf32>
      %cst_53 = arith.constant dense<0.000000e+00> : vector<128x64xf32>
      %73 = tpu.matmul %72, %0, %cst_53 {dimension_numbers = #tpu.dot_dimension_numbers<[1], [0], [0], [1], [0, 0, 1, 1], [], []>} : vector<128x8xf32>, vector<8x64xf32>, vector<128x64xf32> -> vector<128x64xf32>
      %74 = vector.broadcast %1 : vector<1x64xf32> to vector<128x64xf32>
      %75 = arith.addf %73, %74 : vector<128x64xf32>
      %cst_54 = arith.constant 0.000000e+00 : f32
      %76 = vector.broadcast %cst_54 : f32 to vector<128x64xf32>
      %77 = arith.cmpf ogt, %75, %76 : vector<128x64xf32>
      %cst_55 = arith.constant 0.000000e+00 : f32
      %78 = vector.broadcast %cst_55 : f32 to vector<128x64xf32>
      %79 = arith.minimumf %75, %78 : vector<128x64xf32>
      %80 = math.exp %79 : vector<128x64xf32>
      %cst_56 = arith.constant 1.000000e+00 : f32
      %81 = vector.broadcast %cst_56 : f32 to vector<128x64xf32>
      %82 = arith.subf %80, %81 : vector<128x64xf32>
      %83 = arith.select %77, %75, %82 : vector<128x64xi1>, vector<128x64xf32>
      %cst_57 = arith.constant dense<0.000000e+00> : vector<128x128xf32>
      %84 = tpu.matmul %83, %2, %cst_57 {dimension_numbers = #tpu.dot_dimension_numbers<[1], [0], [0], [1], [0, 0, 1, 1], [], []>} : vector<128x64xf32>, vector<64x128xf32>, vector<128x128xf32> -> vector<128x128xf32>
      %85 = vector.broadcast %3 : vector<1x128xf32> to vector<128x128xf32>
      %86 = arith.addf %84, %85 : vector<128x128xf32>
      %cst_58 = arith.constant 0.000000e+00 : f32
      %87 = vector.broadcast %cst_58 : f32 to vector<128x128xf32>
      %88 = arith.cmpf ogt, %86, %87 : vector<128x128xf32>
      %cst_59 = arith.constant 0.000000e+00 : f32
      %89 = vector.broadcast %cst_59 : f32 to vector<128x128xf32>
      %90 = arith.minimumf %86, %89 : vector<128x128xf32>
      %91 = math.exp %90 : vector<128x128xf32>
      %cst_60 = arith.constant 1.000000e+00 : f32
      %92 = vector.broadcast %cst_60 : f32 to vector<128x128xf32>
      %93 = arith.subf %91, %92 : vector<128x128xf32>
      %94 = arith.select %88, %86, %93 : vector<128x128xi1>, vector<128x128xf32>
      %95 = vector.shape_cast %94 : vector<128x128xf32> to vector<16x8x128xf32>
      %cst_61 = arith.constant dense<0.000000e+00> : vector<16x128xf32>
      %96 = vector.multi_reduction <add>, %95, %cst_61 [1] : vector<16x8x128xf32> to vector<16x128xf32>
      %97 = arith.index_cast %70 : i32 to index
      %c0_62 = arith.constant 0 : index
      %98 = vector.load %arg13[%97, %c0_62] : memref<32x128xf32, #tpu.memory_space<vmem>>, vector<16x128xf32>
      tpu.vector_store %arg13[%97, %c0_62], %96 {strides = array<i32>} : memref<32x128xf32, #tpu.memory_space<vmem>>, vector<16x128xf32>,
    }
    %c2_i32_7 = arith.constant 2 : i32
    %c0_8 = arith.constant 0 : index
    %c0_9 = arith.constant 0 : index
    %5 = vector.load %arg13[%c0_8, %c0_9] : memref<32x128xf32, #tpu.memory_space<vmem>>, vector<32x128xf32>
    %c0_10 = arith.constant 0 : index
    %c0_11 = arith.constant 0 : index
    %6 = vector.load %arg6[%c0_10, %c0_11] : memref<128x512xf32, #tpu.memory_space<vmem>>, vector<128x512xf32>
    %cst = arith.constant dense<0.000000e+00> : vector<32x512xf32>
    %7 = tpu.matmul %5, %6, %cst {dimension_numbers = #tpu.dot_dimension_numbers<[1], [0], [0], [1], [0, 0, 1, 1], [], []>} : vector<32x128xf32>, vector<128x512xf32>, vector<32x512xf32> -> vector<32x512xf32>
    %c0_12 = arith.constant 0 : index
    %c0_13 = arith.constant 0 : index
    %8 = vector.load %arg7[%c0_12, %c0_13] : memref<1x512xf32, #tpu.memory_space<vmem>>, vector<1x512xf32>
    %9 = vector.broadcast %8 : vector<1x512xf32> to vector<32x512xf32>
    %10 = arith.addf %7, %9 : vector<32x512xf32>
    %cst_14 = arith.constant 0.000000e+00 : f32
    %11 = vector.broadcast %cst_14 : f32 to vector<32x512xf32>
    %12 = arith.cmpf ogt, %10, %11 : vector<32x512xf32>
    %cst_15 = arith.constant 0.000000e+00 : f32
    %13 = vector.broadcast %cst_15 : f32 to vector<32x512xf32>
    %14 = arith.minimumf %10, %13 : vector<32x512xf32>
    %15 = math.exp %14 : vector<32x512xf32>
    %cst_16 = arith.constant 1.000000e+00 : f32
    %16 = vector.broadcast %cst_16 : f32 to vector<32x512xf32>
    %17 = arith.subf %15, %16 : vector<32x512xf32>
    %18 = arith.select %12, %10, %17 : vector<32x512xi1>, vector<32x512xf32>
    %19 = vector.extract_strided_slice %18 {offsets = [0, 0], sizes = [32, 256], strides = [1, 1]} : vector<32x512xf32> to vector<32x256xf32>
    %c0_17 = arith.constant 0 : index
    %c0_18 = arith.constant 0 : index
    %c0_19 = arith.constant 0 : index
    %20 = vector.load %arg8[%c0_17, %c0_18, %c0_19] : memref<2x256x256xf32, #tpu.memory_space<vmem>>, vector<1x256x256xf32>
    %21 = vector.shape_cast %20 : vector<1x256x256xf32> to vector<256x256xf32>
    %cst_20 = arith.constant dense<0.000000e+00> : vector<32x256xf32>
    %22 = tpu.matmul %19, %21, %cst_20 {dimension_numbers = #tpu.dot_dimension_numbers<[1], [0], [0], [1], [0, 0, 1, 1], [], []>} : vector<32x256xf32>, vector<256x256xf32>, vector<32x256xf32> -> vector<32x256xf32>
    %c0_21 = arith.constant 0 : index
    %c0_22 = arith.constant 0 : index
    %c0_23 = arith.constant 0 : index
    %23 = vector.load %arg9[%c0_21, %c0_22, %c0_23] : memref<2x1x256xf32, #tpu.memory_space<vmem>>, vector<1x1x256xf32>
    %24 = vector.shape_cast %23 : vector<1x1x256xf32> to vector<1x256xf32>
    %25 = vector.broadcast %24 : vector<1x256xf32> to vector<32x256xf32>
    %26 = arith.addf %22, %25 : vector<32x256xf32>
    %cst_24 = arith.constant 0.000000e+00 : f32
    %27 = vector.broadcast %cst_24 : f32 to vector<32x256xf32>
    %28 = arith.cmpf ogt, %26, %27 : vector<32x256xf32>
    %cst_25 = arith.constant 0.000000e+00 : f32
    %29 = vector.broadcast %cst_25 : f32 to vector<32x256xf32>
    %30 = arith.minimumf %26, %29 : vector<32x256xf32>
    %31 = math.exp %30 : vector<32x256xf32>
    %cst_26 = arith.constant 1.000000e+00 : f32
    %32 = vector.broadcast %cst_26 : f32 to vector<32x256xf32>
    %33 = arith.subf %31, %32 : vector<32x256xf32>
    %34 = arith.select %28, %26, %33 : vector<32x256xi1>, vector<32x256xf32>
    %c0_27 = arith.constant 0 : index
    %c0_28 = arith.constant 0 : index
    %c0_29 = arith.constant 0 : index
    %35 = vector.load %arg10[%c0_27, %c0_28, %c0_29] : memref<2x256x128xf32, #tpu.memory_space<vmem>>, vector<1x256x128xf32>
    %36 = vector.shape_cast %35 : vector<1x256x128xf32> to vector<256x128xf32>
    %cst_30 = arith.constant dense<0.000000e+00> : vector<32x128xf32>
    %37 = tpu.matmul %34, %36, %cst_30 {dimension_numbers = #tpu.dot_dimension_numbers<[1], [0], [0], [1], [0, 0, 1, 1], [], []>} : vector<32x256xf32>, vector<256x128xf32>, vector<32x128xf32> -> vector<32x128xf32>
    %c0_31 = arith.constant 0 : index
    %c0_32 = arith.constant 0 : index
    %c0_33 = arith.constant 0 : index
    %38 = vector.load %arg11[%c0_31, %c0_32, %c0_33] : memref<2x1x128xf32, #tpu.memory_space<vmem>>, vector<1x1x128xf32>
    %39 = vector.shape_cast %38 : vector<1x1x128xf32> to vector<1x128xf32>
    %40 = vector.broadcast %39 : vector<1x128xf32> to vector<32x128xf32>
    %41 = arith.addf %37, %40 : vector<32x128xf32>
    %42 = vector.extract_strided_slice %18 {offsets = [0, 256], sizes = [32, 256], strides = [1, 1]} : vector<32x512xf32> to vector<32x256xf32>
    %c1 = arith.constant 1 : index
    %c0_34 = arith.constant 0 : index
    %c0_35 = arith.constant 0 : index
    %43 = vector.load %arg8[%c1, %c0_34, %c0_35] : memref<2x256x256xf32, #tpu.memory_space<vmem>>, vector<1x256x256xf32>
    %44 = vector.shape_cast %43 : vector<1x256x256xf32> to vector<256x256xf32>
    %cst_36 = arith.constant dense<0.000000e+00> : vector<32x256xf32>
    %45 = tpu.matmul %42, %44, %cst_36 {dimension_numbers = #tpu.dot_dimension_numbers<[1], [0], [0], [1], [0, 0, 1, 1], [], []>} : vector<32x256xf32>, vector<256x256xf32>, vector<32x256xf32> -> vector<32x256xf32>
    %c1_37 = arith.constant 1 : index
    %c0_38 = arith.constant 0 : index
    %c0_39 = arith.constant 0 : index
    %46 = vector.load %arg9[%c1_37, %c0_38, %c0_39] : memref<2x1x256xf32, #tpu.memory_space<vmem>>, vector<1x1x256xf32>
    %47 = vector.shape_cast %46 : vector<1x1x256xf32> to vector<1x256xf32>
    %48 = vector.broadcast %47 : vector<1x256xf32> to vector<32x256xf32>
    %49 = arith.addf %45, %48 : vector<32x256xf32>
    %cst_40 = arith.constant 0.000000e+00 : f32
    %50 = vector.broadcast %cst_40 : f32 to vector<32x256xf32>
    %51 = arith.cmpf ogt, %49, %50 : vector<32x256xf32>
    %cst_41 = arith.constant 0.000000e+00 : f32
    %52 = vector.broadcast %cst_41 : f32 to vector<32x256xf32>
    %53 = arith.minimumf %49, %52 : vector<32x256xf32>
    %54 = math.exp %53 : vector<32x256xf32>
    %cst_42 = arith.constant 1.000000e+00 : f32
    %55 = vector.broadcast %cst_42 : f32 to vector<32x256xf32>
    %56 = arith.subf %54, %55 : vector<32x256xf32>
    %57 = arith.select %51, %49, %56 : vector<32x256xi1>, vector<32x256xf32>
    %c1_43 = arith.constant 1 : index
    %c0_44 = arith.constant 0 : index
    %c0_45 = arith.constant 0 : index
    %58 = vector.load %arg10[%c1_43, %c0_44, %c0_45] : memref<2x256x128xf32, #tpu.memory_space<vmem>>, vector<1x256x128xf32>
    %59 = vector.shape_cast %58 : vector<1x256x128xf32> to vector<256x128xf32>
    %cst_46 = arith.constant dense<0.000000e+00> : vector<32x128xf32>
    %60 = tpu.matmul %57, %59, %cst_46 {dimension_numbers = #tpu.dot_dimension_numbers<[1], [0], [0], [1], [0, 0, 1, 1], [], []>} : vector<32x256xf32>, vector<256x128xf32>, vector<32x128xf32> -> vector<32x128xf32>
    %c1_47 = arith.constant 1 : index
    %c0_48 = arith.constant 0 : index
    %c0_49 = arith.constant 0 : index
    %61 = vector.load %arg11[%c1_47, %c0_48, %c0_49] : memref<2x1x128xf32, #tpu.memory_space<vmem>>, vector<1x1x128xf32>
    %62 = vector.shape_cast %61 : vector<1x1x128xf32> to vector<1x128xf32>
    %63 = vector.broadcast %62 : vector<1x128xf32> to vector<32x128xf32>
    %64 = arith.addf %60, %63 : vector<32x128xf32>
    %65 = arith.minimumf %41, %64 : vector<32x128xf32>
    %c0_50 = arith.constant 0 : index
    %c0_51 = arith.constant 0 : index
    %66 = vector.load %arg12[%c0_50, %c0_51] : memref<32x128xf32, #tpu.memory_space<vmem>>, vector<32x128xf32>
    tpu.vector_store %arg12[%c0_50, %c0_51], %65 {strides = array<i32>} : memref<32x128xf32, #tpu.memory_space<vmem>>, vector<32x128xf32>,
    return
  }
  func.func @transform_0(%arg0: i32) -> (i32, i32) {
    %c0_i32 = arith.constant 0 : i32
    %c0_i32_0 = arith.constant 0 : i32
    return %arg0, %c0_i32 : i32, i32
  }
  func.func @transform_1(%arg0: i32) -> (i32, i32) {
    %c0_i32 = arith.constant 0 : i32
    %c0_i32_0 = arith.constant 0 : i32
    %c0_i32_1 = arith.constant 0 : i32
    return %c0_i32, %c0_i32_0 : i32, i32
  }
  func.func @transform_2(%arg0: i32) -> (i32, i32) {
    %c0_i32 = arith.constant 0 : i32
    %c0_i32_0 = arith.constant 0 : i32
    %c0_i32_1 = arith.constant 0 : i32
    return %c0_i32, %c0_i32_0 : i32, i32
  }
  func.func @transform_3(%arg0: i32) -> (i32, i32) {
    %c0_i32 = arith.constant 0 : i32
    %c0_i32_0 = arith.constant 0 : i32
    %c0_i32_1 = arith.constant 0 : i32
    return %c0_i32, %c0_i32_0 : i32, i32
  }
  func.func @transform_4(%arg0: i32) -> (i32, i32) {
    %c0_i32 = arith.constant 0 : i32
    %c0_i32_0 = arith.constant 0 : i32
    %c0_i32_1 = arith.constant 0 : i32
    return %c0_i32, %c0_i32_0 : i32, i32
  }
  func.func @transform_5(%arg0: i32) -> (i32, i32) {
    %c0_i32 = arith.constant 0 : i32
    %c0_i32_0 = arith.constant 0 : i32
    %c0_i32_1 = arith.constant 0 : i32
    return %c0_i32, %c0_i32_0 : i32, i32
  }
  func.func @transform_6(%arg0: i32) -> (i32, i32) {
    %c0_i32 = arith.constant 0 : i32
    %c0_i32_0 = arith.constant 0 : i32
    %c0_i32_1 = arith.constant 0 : i32
    return %c0_i32, %c0_i32_0 : i32, i32
  }
  func.func @transform_7(%arg0: i32) -> (i32, i32, i32) {
    %c0_i32 = arith.constant 0 : i32
    %c0_i32_0 = arith.constant 0 : i32
    %c0_i32_1 = arith.constant 0 : i32
    %c0_i32_2 = arith.constant 0 : i32
    return %c0_i32, %c0_i32_0, %c0_i32_1 : i32, i32, i32
  }
  func.func @transform_8(%arg0: i32) -> (i32, i32, i32) {
    %c0_i32 = arith.constant 0 : i32
    %c0_i32_0 = arith.constant 0 : i32
    %c0_i32_1 = arith.constant 0 : i32
    %c0_i32_2 = arith.constant 0 : i32
    return %c0_i32, %c0_i32_0, %c0_i32_1 : i32, i32, i32
  }
  func.func @transform_9(%arg0: i32) -> (i32, i32, i32) {
    %c0_i32 = arith.constant 0 : i32
    %c0_i32_0 = arith.constant 0 : i32
    %c0_i32_1 = arith.constant 0 : i32
    %c0_i32_2 = arith.constant 0 : i32
    return %c0_i32, %c0_i32_0, %c0_i32_1 : i32, i32, i32
  }
  func.func @transform_10(%arg0: i32) -> (i32, i32, i32) {
    %c0_i32 = arith.constant 0 : i32
    %c0_i32_0 = arith.constant 0 : i32
    %c0_i32_1 = arith.constant 0 : i32
    %c0_i32_2 = arith.constant 0 : i32
    return %c0_i32, %c0_i32_0, %c0_i32_1 : i32, i32, i32
  }
  func.func @transform_11(%arg0: i32) -> (i32, i32) {
    %c0_i32 = arith.constant 0 : i32
    %c0_i32_0 = arith.constant 0 : i32
    return %arg0, %c0_i32 : i32, i32
  }
}

</mosaic_0001>

<llo_original>
// kernel: tpu_custom_call.1
$region0: #{tpu_custom_call.1}
  #allocation0 [shape = 'u32[]', space=smem, size = 0x4, offset = 0x4, fixed_abs, tag = 'smem constant byte address 0x4 - core index']
  #allocation1 [shape = 'u32[72,128]{1,0:T(1,128)}', space=vmem, size = 0x9000, scoped, tag = 'internal scratch']
  #allocation2 [shape = 'f32[32,128]{1,0:T(8,128)}', space=vmem, size = 0x4000, scoped, tag = 'scratch operand']
  %s0 = inlined_call_operand.vmem [shape: f32[256,8], index: 0, kind: input, shape index: {}]
  %s1 = inlined_call_operand.vmem [shape: f32[8,64], index: 1, kind: input, shape index: {}]
  %s2 = inlined_call_operand.vmem [shape: f32[1,64], index: 2, kind: input, shape index: {}]
  %s3 = inlined_call_operand.vmem [shape: f32[64,128], index: 3, kind: input, shape index: {}]
  %s4 = inlined_call_operand.vmem [shape: f32[1,128], index: 4, kind: input, shape index: {}]
  %s5 = inlined_call_operand.hbm [shape: f32[128,512], index: 5, kind: input, shape index: {}]
  %s6 = inlined_call_operand.vmem [shape: f32[1,512], index: 6, kind: input, shape index: {}]
  %s7 = inlined_call_operand.hbm [shape: f32[2,256,256], index: 7, kind: input, shape index: {}]
  %s8 = inlined_call_operand.vmem [shape: f32[2,1,256], index: 8, kind: input, shape index: {}]
  %s9 = inlined_call_operand.hbm [shape: f32[2,256,128], index: 9, kind: input, shape index: {}]
  %s10 = inlined_call_operand.vmem [shape: f32[2,1,128], index: 10, kind: input, shape index: {}]
  %s11 = inlined_call_operand.hbm [shape: f32[32,128], index: 11, kind: output, shape index: {}]
  %s12 = sld [smem:[#allocation0]]
  $region73: #{tpu_custom_call.1} parent=0
    _
  %s14 = ssub.s32 1, %s12
  %s15 = scalar_select 0, %s14, %s12
  $region1: #{tpu_custom_call.1} parent=0
    #allocation3 [shape = 'u8[262144]{0}', space=vmem, size = 0x40000, scoped, tag = 'input window, operand 5, single buffered']
    #allocation4 [shape = 's32[1]{0}', space=sflag, size = 0x4, scoped, tag = 'scoped memory for tpu_custom_call.1']
    #allocation5 [shape = 's32[1]{0}', space=sflag, size = 0x4, scoped, tag = 'scoped memory for tpu_custom_call.1']
    #allocation6 [shape = 'u8[524288]{0}', space=vmem, size = 0x80000, scoped, tag = 'input window, operand 7, single buffered']
    #allocation7 [shape = 's32[1]{0}', space=sflag, size = 0x4, scoped, tag = 'scoped memory for tpu_custom_call.1']
    #allocation8 [shape = 'u8[262144]{0}', space=vmem, size = 0x40000, scoped, tag = 'input window, operand 9, single buffered']
    #allocation9 [shape = 'u8[16384]{0}', space=vmem, size = 0x4000, scoped, tag = 'output window, operand 0, single buffered']
    %16 = vsyncpa [#allocation4], 0
    %17 = vsyncpa [#allocation7], 0
    %18 = vsyncpa [#allocation5], 0
    // Predicated region
    $region2: #{tpu_custom_call.1} parent=1 // pred_check
      _
    $region3: #{tpu_custom_call.1} parent=1 // pred_check_branch
      %20 = sbr.rel (0) target = $region5
    $region4: #{tpu_custom_call.1} parent=1 // pred_region
      _
    $region5: #{tpu_custom_call.1} parent=1 // pred_fallthru
      _
    // Predicated region
    $region6: #{tpu_custom_call.1} parent=1 // pred_check
      _
    $region7: #{tpu_custom_call.1} parent=1 // pred_check_branch
      %22 = sbr.rel (0) target = $region9
    $region8: #{tpu_custom_call.1} parent=1 // pred_region
      _
    $region9: #{tpu_custom_call.1} parent=1 // pred_fallthru
      _
    // Predicated region
    $region10: #{tpu_custom_call.1} parent=1 // pred_check
      _
    $region11: #{tpu_custom_call.1} parent=1 // pred_check_branch
      %24 = sbr.rel (0) target = $region13
    $region12: #{tpu_custom_call.1} parent=1 // pred_region
      _
    $region13: #{tpu_custom_call.1} parent=1 // pred_fallthru
      _
    // Predicated region
    $region14: #{tpu_custom_call.1} parent=1 // pred_check
      _
    $region15: #{tpu_custom_call.1} parent=1 // pred_check_branch
      %26 = sbr.rel (0) target = $region17
    $region16: #{tpu_custom_call.1} parent=1 // pred_region
      _
    $region17: #{tpu_custom_call.1} parent=1 // pred_fallthru
      _
    // Predicated region
    $region18: #{tpu_custom_call.1} parent=1 // pred_check
      _
    $region19: #{tpu_custom_call.1} parent=1 // pred_check_branch
      %28 = sbr.rel (0) target = $region21
    $region20: #{tpu_custom_call.1} parent=1 // pred_region
      _
    $region21: #{tpu_custom_call.1} parent=1 // pred_fallthru
      _
    // Predicated region
    $region22: #{tpu_custom_call.1} parent=1 // pred_check
      _
    $region23: #{tpu_custom_call.1} parent=1 // pred_check_branch
      %30 = sbr.rel (0) target = $region25
    $region24: #{tpu_custom_call.1} parent=1 // pred_region
      %32 = vsyncadd [#allocation4], 0
      %s33 = sshll.u32 %s5, 4
      %s34 = int_to_ptr.hbm [resolvable:$true] %s33
      %s35 = sshll.u32 [#allocation3], 4
      %s36 = int_to_ptr.vmem [resolvable:$true] %s35
      %41 = dma.hbm_to_vmem [thread:$0]  %s34, 8192, %s36, [#allocation4], 512, 512, 32
    $region25: #{tpu_custom_call.1} parent=1 // pred_fallthru
      _
    // Predicated region
    $region26: #{tpu_custom_call.1} parent=1 // pred_check
      _
    $region27: #{tpu_custom_call.1} parent=1 // pred_check_branch
      %43 = sbr.rel (0) target = $region29
    $region28: #{tpu_custom_call.1} parent=1 // pred_region
      _
    $region29: #{tpu_custom_call.1} parent=1 // pred_fallthru
      _
    // Predicated region
    $region30: #{tpu_custom_call.1} parent=1 // pred_check
      _
    $region31: #{tpu_custom_call.1} parent=1 // pred_check_branch
      %45 = sbr.rel (0) target = $region33
    $region32: #{tpu_custom_call.1} parent=1 // pred_region
      %47 = vsyncadd [#allocation7], 0
      %s48 = sshll.u32 %s7, 4
      %s49 = int_to_ptr.hbm [resolvable:$true] %s48
      %s50 = sshll.u32 [#allocation6], 4
      %s51 = int_to_ptr.vmem [resolvable:$true] %s50
      %56 = dma.hbm_to_vmem [thread:$0]  %s49, 16384, %s51, [#allocation7], 256, 256, 16
    $region33: #{tpu_custom_call.1} parent=1 // pred_fallthru
      _
    // Predicated region
    $region34: #{tpu_custom_call.1} parent=1 // pred_check
      _
    $region35: #{tpu_custom_call.1} parent=1 // pred_check_branch
      %58 = sbr.rel (0) target = $region37
    $region36: #{tpu_custom_call.1} parent=1 // pred_region
      _
    $region37: #{tpu_custom_call.1} parent=1 // pred_fallthru
      _
    // Predicated region
    $region38: #{tpu_custom_call.1} parent=1 // pred_check
      _
    $region39: #{tpu_custom_call.1} parent=1 // pred_check_branch
      %60 = sbr.rel (0) target = $region41
    $region40: #{tpu_custom_call.1} parent=1 // pred_region
      %62 = vsyncadd [#allocation7], 0
      %s63 = sshll.u32 %s9, 4
      %s64 = int_to_ptr.hbm [resolvable:$true] %s63
      %s65 = sshll.u32 [#allocation8], 4
      %s66 = int_to_ptr.vmem [resolvable:$true] %s65
      %71 = dma.hbm_to_vmem [thread:$0]  %s64, 8192, %s66, [#allocation7], 128, 128, 8
    $region41: #{tpu_custom_call.1} parent=1 // pred_fallthru
      _
    // Predicated region
    $region42: #{tpu_custom_call.1} parent=1 // pred_check
      _
    $region43: #{tpu_custom_call.1} parent=1 // pred_check_branch
      %73 = sbr.rel (0) target = $region45
    $region44: #{tpu_custom_call.1} parent=1 // pred_region
      _
    $region45: #{tpu_custom_call.1} parent=1 // pred_fallthru
      _
    // Predicated region
    $region46: #{tpu_custom_call.1} parent=1 // pred_check
      _
    $region47: #{tpu_custom_call.1} parent=1 // pred_check_branch
      %75 = sbr.rel (0) target = $region49
    $region48: #{tpu_custom_call.1} parent=1 // pred_region
      %77 = dma.done [#allocation4], 8192
    $region49: #{tpu_custom_call.1} parent=1 // pred_fallthru
      _
    // Predicated region
    $region50: #{tpu_custom_call.1} parent=1 // pred_check
      _
    $region51: #{tpu_custom_call.1} parent=1 // pred_check_branch
      %79 = sbr.rel (0) target = $region53
    $region52: #{tpu_custom_call.1} parent=1 // pred_region
      %81 = dma.done [#allocation7], 16384
    $region53: #{tpu_custom_call.1} parent=1 // pred_fallthru
      _
    // Predicated region
    $region54: #{tpu_custom_call.1} parent=1 // pred_check
      _
    $region55: #{tpu_custom_call.1} parent=1 // pred_check_branch
      %83 = sbr.rel (0) target = $region57
    $region56: #{tpu_custom_call.1} parent=1 // pred_region
      %85 = dma.done [#allocation7], 8192
    $region57: #{tpu_custom_call.1} parent=1 // pred_fallthru
      _
    %v86 = vld [vmem:[%s1] sm:$0xff]
    %v87 = vld [vmem:[%s2] sm:$0x1]
    %v88 = vld [vmem:[%s3] sm:$0xff]
    %v89 = vld [vmem:[%s3 + $0x8] sm:$0xff]
    %v90 = vld [vmem:[%s3 + $0x10] sm:$0xff]
    %v91 = vld [vmem:[%s3 + $0x18] sm:$0xff]
    %v92 = vld [vmem:[%s3 + $0x20] sm:$0xff]
    %v93 = vld [vmem:[%s3 + $0x28] sm:$0xff]
    %v94 = vld [vmem:[%s3 + $0x30] sm:$0xff]
    %v95 = vld [vmem:[%s3 + $0x38] sm:$0xff]
    %v96 = vld [vmem:[%s4] sm:$0x1]
    loop: start=0, step=1, limit=2
    $region58: #{tpu_custom_call.1} parent=1 // loop_pre_header
      _
    $region59: #{tpu_custom_call.1} parent=1 // loop_header
      %s98 = sphi 0, %s102
      %p99 = scmp.ge.s32.totalorder %s98, 2
    $region60: #{tpu_custom_call.1} parent=1 // loop_header_branch
      %101 = sbr.rel (%p99) target = $region64
    $region61: #{tpu_custom_call.1} parent=1 // loop_body
      %s103 = smul.u32 %s98, 128
      %s104 = smul.u32 %s98, 16
      %s105 = scalar_lea.vmem %s0, %s103
      %v106 = vld [vmem:[%s105] sm:$0xff]
      %v107 = vld [vmem:[%s105 + $0x8] sm:$0xff]
      %v108 = vld [vmem:[%s105 + $0x10] sm:$0xff]
      %v109 = vld [vmem:[%s105 + $0x18] sm:$0xff]
      %v110 = vld [vmem:[%s105 + $0x20] sm:$0xff]
      %v111 = vld [vmem:[%s105 + $0x28] sm:$0xff]
      %v112 = vld [vmem:[%s105 + $0x30] sm:$0xff]
      %v113 = vld [vmem:[%s105 + $0x38] sm:$0xff]
      %v114 = vld [vmem:[%s105 + $0x40] sm:$0xff]
      %v115 = vld [vmem:[%s105 + $0x48] sm:$0xff]
      %v116 = vld [vmem:[%s105 + $0x50] sm:$0xff]
      %v117 = vld [vmem:[%s105 + $0x58] sm:$0xff]
      %v118 = vld [vmem:[%s105 + $0x60] sm:$0xff]
      %v119 = vld [vmem:[%s105 + $0x68] sm:$0xff]
      %v120 = vld [vmem:[%s105 + $0x70] sm:$0xff]
      %v121 = vld [vmem:[%s105 + $0x78] sm:$0xff]
      %v123 = vperm.slane %v87, 0
      %vm125 = vcmask 64512
      %v127 = vsel %vm125, %v106, 0
      %v130 = vsel %vm125, %v107, 0
      %v133 = vsel %vm125, %v108, 0
      %v136 = vsel %vm125, %v109, 0
      %v139 = vsel %vm125, %v110, 0
      %v142 = vsel %vm125, %v111, 0
      %v145 = vsel %vm125, %v112, 0
      %v148 = vsel %vm125, %v113, 0
      %v151 = vsel %vm125, %v114, 0
      %v154 = vsel %vm125, %v115, 0
      %v157 = vsel %vm125, %v116, 0
      %v160 = vsel %vm125, %v117, 0
      %v163 = vsel %vm125, %v118, 0
      %v166 = vsel %vm125, %v119, 0
      %v169 = vsel %vm125, %v120, 0
      %v172 = vsel %vm125, %v121, 0
      %174 = vmatpush.msra.mxu0 0.0
      %175 = vmatpush.msra.mxu0 0.0
      %176 = vmatpush.msra.mxu0 0.0
      %177 = vmatpush.msra.mxu0 0.0
      %178 = vmatpush.msra.mxu0 0.0
      %179 = vmatpush.msra.mxu0 0.0
      %180 = vmatpush.msra.mxu0 0.0
      %181 = vmatpush.msra.mxu0 0.0
      %182 = vmatpush.msra.mxu0 0.0
      %183 = vmatpush.msra.mxu0 0.0
      %184 = vmatpush.msra.mxu0 0.0
      %185 = vmatpush.msra.mxu0 0.0
      %186 = vmatpush.msra.mxu0 0.0
      %187 = vmatpush.msra.mxu0 0.0
      %188 = vmatpush.msra.mxu0 0.0
      %189 = vmatpush.msra.mxu0 %v86
      %190 = vmatmul.f32.gmra.mxu0 %v127
      %v191 = vpop.f32.mrf.mxu0
      %v192 = vadd.f32 %v123, %v191
      %193 = vmatmul.f32.gmra.mxu0 %v130
      %v194 = vpop.f32.mrf.mxu0
      %v195 = vadd.f32 %v123, %v194
      %196 = vmatmul.f32.gmra.mxu0 %v133
      %v197 = vpop.f32.mrf.mxu0
      %v198 = vadd.f32 %v123, %v197
      %199 = vmatmul.f32.gmra.mxu0 %v136
      %v200 = vpop.f32.mrf.mxu0
      %v201 = vadd.f32 %v123, %v200
      %202 = vmatmul.f32.gmra.mxu0 %v139
      %v203 = vpop.f32.mrf.mxu0
      %v204 = vadd.f32 %v123, %v203
      %205 = vmatmul.f32.gmra.mxu0 %v142
      %v206 = vpop.f32.mrf.mxu0
      %v207 = vadd.f32 %v123, %v206
      %208 = vmatmul.f32.gmra.mxu0 %v145
      %v209 = vpop.f32.mrf.mxu0
      %v210 = vadd.f32 %v123, %v209
      %211 = vmatmul.f32.gmra.mxu0 %v148
      %v212 = vpop.f32.mrf.mxu0
      %v213 = vadd.f32 %v123, %v212
      %214 = vmatmul.f32.gmra.mxu0 %v151
      %v215 = vpop.f32.mrf.mxu0
      %v216 = vadd.f32 %v123, %v215
      %217 = vmatmul.f32.gmra.mxu0 %v154
      %v218 = vpop.f32.mrf.mxu0
      %v219 = vadd.f32 %v123, %v218
      %220 = vmatmul.f32.gmra.mxu0 %v157
      %v221 = vpop.f32.mrf.mxu0
      %v222 = vadd.f32 %v123, %v221
      %223 = vmatmul.f32.gmra.mxu0 %v160
      %v224 = vpop.f32.mrf.mxu0
      %v225 = vadd.f32 %v123, %v224
      %226 = vmatmul.f32.gmra.mxu0 %v163
      %v227 = vpop.f32.mrf.mxu0
      %v228 = vadd.f32 %v123, %v227
      %229 = vmatmul.f32.gmra.mxu0 %v166
      %v230 = vpop.f32.mrf.mxu0
      %v231 = vadd.f32 %v123, %v230
      %232 = vmatmul.f32.gmra.mxu0 %v169
      %v233 = vpop.f32.mrf.mxu0
      %v234 = vadd.f32 %v123, %v233
      %235 = vmatmul.f32.gmra.mxu0 %v172
      %v236 = vpop.f32.mrf.mxu0
      %v237 = vadd.f32 %v123, %v236
      %238 = vdwg.mxu0
      %vm239 = vcmp.gt.f32.partialorder %v192, 0.0
      %vm240 = vcmp.gt.f32.partialorder %v195, 0.0
      %vm241 = vcmp.gt.f32.partialorder %v198, 0.0
      %vm242 = vcmp.gt.f32.partialorder %v201, 0.0
      %vm243 = vcmp.gt.f32.partialorder %v204, 0.0
      %vm244 = vcmp.gt.f32.partialorder %v207, 0.0
      %vm245 = vcmp.gt.f32.partialorder %v210, 0.0
      %vm246 = vcmp.gt.f32.partialorder %v213, 0.0
      %vm247 = vcmp.gt.f32.partialorder %v216, 0.0
      %vm248 = vcmp.gt.f32.partialorder %v219, 0.0
      %vm249 = vcmp.gt.f32.partialorder %v222, 0.0
      %vm250 = vcmp.gt.f32.partialorder %v225, 0.0
      %vm251 = vcmp.gt.f32.partialorder %v228, 0.0
      %vm252 = vcmp.gt.f32.partialorder %v231, 0.0
      %vm253 = vcmp.gt.f32.partialorder %v234, 0.0
      %vm254 = vcmp.gt.f32.partialorder %v237, 0.0
      %v255 = vmin.f32 %v192, 0.0
      %v256 = vmin.f32 %v195, 0.0
      %v257 = vmin.f32 %v198, 0.0
      %v258 = vmin.f32 %v201, 0.0
      %v259 = vmin.f32 %v204, 0.0
      %v260 = vmin.f32 %v207, 0.0
      %v261 = vmin.f32 %v210, 0.0
      %v262 = vmin.f32 %v213, 0.0
      %v263 = vmin.f32 %v216, 0.0
      %v264 = vmin.f32 %v219, 0.0
      %v265 = vmin.f32 %v222, 0.0
      %v266 = vmin.f32 %v225, 0.0
      %v267 = vmin.f32 %v228, 0.0
      %v268 = vmin.f32 %v231, 0.0
      %v269 = vmin.f32 %v234, 0.0
      %v270 = vmin.f32 %v237, 0.0
      %v271 = vmul.f32 %v255, 1.442695
      %v272 = vpow.pop %v271
      %v273 = vmul.f32 %v256, 1.442695
      %v274 = vpow.pop %v273
      %v275 = vmul.f32 %v257, 1.442695
      %v276 = vpow.pop %v275
      %v277 = vmul.f32 %v258, 1.442695
      %v278 = vpow.pop %v277
      %v279 = vmul.f32 %v259, 1.442695
      %v280 = vpow.pop %v279
      %v281 = vmul.f32 %v260, 1.442695
      %v282 = vpow.pop %v281
      %v283 = vmul.f32 %v261, 1.442695
      %v284 = vpow.pop %v283
      %v285 = vmul.f32 %v262, 1.442695
      %v286 = vpow.pop %v285
      %v287 = vmul.f32 %v263, 1.442695
      %v288 = vpow.pop %v287
      %v289 = vmul.f32 %v264, 1.442695
      %v290 = vpow.pop %v289
      %v291 = vmul.f32 %v265, 1.442695
      %v292 = vpow.pop %v291
      %v293 = vmul.f32 %v266, 1.442695
      %v294 = vpow.pop %v293
      %v295 = vmul.f32 %v267, 1.442695
      %v296 = vpow.pop %v295
      %v297 = vmul.f32 %v268, 1.442695
      %v298 = vpow.pop %v297
      %v299 = vmul.f32 %v269, 1.442695
      %v300 = vpow.pop %v299
      %v301 = vmul.f32 %v270, 1.442695
      %v302 = vpow.pop %v301
      %v303 = vsub.f32 %v272, 1.0
      %v304 = vsub.f32 %v274, 1.0
      %v305 = vsub.f32 %v276, 1.0
      %v306 = vsub.f32 %v278, 1.0
      %v307 = vsub.f32 %v280, 1.0
      %v308 = vsub.f32 %v282, 1.0
      %v309 = vsub.f32 %v284, 1.0
      %v310 = vsub.f32 %v286, 1.0
      %v311 = vsub.f32 %v288, 1.0
      %v312 = vsub.f32 %v290, 1.0
      %v313 = vsub.f32 %v292, 1.0
      %v314 = vsub.f32 %v294, 1.0
      %v315 = vsub.f32 %v296, 1.0
      %v316 = vsub.f32 %v298, 1.0
      %v317 = vsub.f32 %v300, 1.0
      %v318 = vsub.f32 %v302, 1.0
      %v319 = vsel %vm239, %v192, %v303
      %v320 = vsel %vm240, %v195, %v304
      %v321 = vsel %vm241, %v198, %v305
      %v322 = vsel %vm242, %v201, %v306
      %v323 = vsel %vm243, %v204, %v307
      %v324 = vsel %vm244, %v207, %v308
      %v325 = vsel %vm245, %v210, %v309
      %v326 = vsel %vm246, %v213, %v310
      %v327 = vsel %vm247, %v216, %v311
      %v328 = vsel %vm248, %v219, %v312
      %v329 = vsel %vm249, %v222, %v313
      %v330 = vsel %vm250, %v225, %v314
      %v331 = vsel %vm251, %v228, %v315
      %v332 = vsel %vm252, %v231, %v316
      %v333 = vsel %vm253, %v234, %v317
      %v334 = vsel %vm254, %v237, %v318
      %v336 = vperm.slane %v96, 0
      %vm338 = vcmask 523264
      %v340 = vsel %vm338, %v319, 0
      %v343 = vsel %vm338, %v320, 0
      %v346 = vsel %vm338, %v321, 0
      %v349 = vsel %vm338, %v322, 0
      %v352 = vsel %vm338, %v323, 0
      %v355 = vsel %vm338, %v324, 0
      %v358 = vsel %vm338, %v325, 0
      %v361 = vsel %vm338, %v326, 0
      %v364 = vsel %vm338, %v327, 0
      %v367 = vsel %vm338, %v328, 0
      %v370 = vsel %vm338, %v329, 0
      %v373 = vsel %vm338, %v330, 0
      %v376 = vsel %vm338, %v331, 0
      %v379 = vsel %vm338, %v332, 0
      %v382 = vsel %vm338, %v333, 0
      %v385 = vsel %vm338, %v334, 0
      %387 = vmatpush.msra.mxu0 0.0
      %388 = vmatpush.msra.mxu0 0.0
      %389 = vmatpush.msra.mxu0 0.0
      %390 = vmatpush.msra.mxu0 0.0
      %391 = vmatpush.msra.mxu0 0.0
      %392 = vmatpush.msra.mxu0 0.0
      %393 = vmatpush.msra.mxu0 0.0
      %394 = vmatpush.msra.mxu0 0.0
      %395 = vmatpush.msra.mxu0 %v95
      %396 = vmatpush.msra.mxu0 %v94
      %397 = vmatpush.msra.mxu0 %v93
      %398 = vmatpush.msra.mxu0 %v92
      %399 = vmatpush.msra.mxu0 %v91
      %400 = vmatpush.msra.mxu0 %v90
      %401 = vmatpush.msra.mxu0 %v89
      %402 = vmatpush.msra.mxu0 %v88
      %403 = vmatmul.f32.gmra.mxu0 %v340
      %v404 = vpop.f32.mrf.mxu0
      %v405 = vadd.f32 %v336, %v404
      %406 = vmatmul.f32.gmra.mxu0 %v343
      %v407 = vpop.f32.mrf.mxu0
      %v408 = vadd.f32 %v336, %v407
      %409 = vmatmul.f32.gmra.mxu0 %v346
      %v410 = vpop.f32.mrf.mxu0
      %v411 = vadd.f32 %v336, %v410
      %412 = vmatmul.f32.gmra.mxu0 %v349
      %v413 = vpop.f32.mrf.mxu0
      %v414 = vadd.f32 %v336, %v413
      %415 = vmatmul.f32.gmra.mxu0 %v352
      %v416 = vpop.f32.mrf.mxu0
      %v417 = vadd.f32 %v336, %v416
      %418 = vmatmul.f32.gmra.mxu0 %v355
      %v419 = vpop.f32.mrf.mxu0
      %v420 = vadd.f32 %v336, %v419
      %421 = vmatmul.f32.gmra.mxu0 %v358
      %v422 = vpop.f32.mrf.mxu0
      %v423 = vadd.f32 %v336, %v422
      %424 = vmatmul.f32.gmra.mxu0 %v361
      %v425 = vpop.f32.mrf.mxu0
      %v426 = vadd.f32 %v336, %v425
      %427 = vmatmul.f32.gmra.mxu0 %v364
      %v428 = vpop.f32.mrf.mxu0
      %v429 = vadd.f32 %v336, %v428
      %430 = vmatmul.f32.gmra.mxu0 %v367
      %v431 = vpop.f32.mrf.mxu0
      %v432 = vadd.f32 %v336, %v431
      %433 = vmatmul.f32.gmra.mxu0 %v370
      %v434 = vpop.f32.mrf.mxu0
      %v435 = vadd.f32 %v336, %v434
      %436 = vmatmul.f32.gmra.mxu0 %v373
      %v437 = vpop.f32.mrf.mxu0
      %v438 = vadd.f32 %v336, %v437
      %439 = vmatmul.f32.gmra.mxu0 %v376
      %v440 = vpop.f32.mrf.mxu0
      %v441 = vadd.f32 %v336, %v440
      %442 = vmatmul.f32.gmra.mxu0 %v379
      %v443 = vpop.f32.mrf.mxu0
      %v444 = vadd.f32 %v336, %v443
      %445 = vmatmul.f32.gmra.mxu0 %v382
      %v446 = vpop.f32.mrf.mxu0
      %v447 = vadd.f32 %v336, %v446
      %448 = vmatmul.f32.gmra.mxu0 %v385
      %v449 = vpop.f32.mrf.mxu0
      %v450 = vadd.f32 %v336, %v449
      %451 = vdwg.mxu0
      %vm452 = vcmp.gt.f32.partialorder %v405, 0.0
      %vm453 = vcmp.gt.f32.partialorder %v408, 0.0
      %vm454 = vcmp.gt.f32.partialorder %v411, 0.0
      %vm455 = vcmp.gt.f32.partialorder %v414, 0.0
      %vm456 = vcmp.gt.f32.partialorder %v417, 0.0
      %vm457 = vcmp.gt.f32.partialorder %v420, 0.0
      %vm458 = vcmp.gt.f32.partialorder %v423, 0.0
      %vm459 = vcmp.gt.f32.partialorder %v426, 0.0
      %vm460 = vcmp.gt.f32.partialorder %v429, 0.0
      %vm461 = vcmp.gt.f32.partialorder %v432, 0.0
      %vm462 = vcmp.gt.f32.partialorder %v435, 0.0
      %vm463 = vcmp.gt.f32.partialorder %v438, 0.0
      %vm464 = vcmp.gt.f32.partialorder %v441, 0.0
      %vm465 = vcmp.gt.f32.partialorder %v444, 0.0
      %vm466 = vcmp.gt.f32.partialorder %v447, 0.0
      %vm467 = vcmp.gt.f32.partialorder %v450, 0.0
      %v468 = vmin.f32 %v405, 0.0
      %v469 = vmin.f32 %v408, 0.0
      %v470 = vmin.f32 %v411, 0.0
      %v471 = vmin.f32 %v414, 0.0
      %v472 = vmin.f32 %v417, 0.0
      %v473 = vmin.f32 %v420, 0.0
      %v474 = vmin.f32 %v423, 0.0
      %v475 = vmin.f32 %v426, 0.0
      %v476 = vmin.f32 %v429, 0.0
      %v477 = vmin.f32 %v432, 0.0
      %v478 = vmin.f32 %v435, 0.0
      %v479 = vmin.f32 %v438, 0.0
      %v480 = vmin.f32 %v441, 0.0
      %v481 = vmin.f32 %v444, 0.0
      %v482 = vmin.f32 %v447, 0.0
      %v483 = vmin.f32 %v450, 0.0
      %v484 = vmul.f32 %v468, 1.442695
      %v485 = vpow.pop %v484
      %v486 = vmul.f32 %v469, 1.442695
      %v487 = vpow.pop %v486
      %v488 = vmul.f32 %v470, 1.442695
      %v489 = vpow.pop %v488
      %v490 = vmul.f32 %v471, 1.442695
      %v491 = vpow.pop %v490
      %v492 = vmul.f32 %v472, 1.442695
      %v493 = vpow.pop %v492
      %v494 = vmul.f32 %v473, 1.442695
      %v495 = vpow.pop %v494
      %v496 = vmul.f32 %v474, 1.442695
      %v497 = vpow.pop %v496
      %v498 = vmul.f32 %v475, 1.442695
      %v499 = vpow.pop %v498
      %v500 = vmul.f32 %v476, 1.442695
      %v501 = vpow.pop %v500
      %v502 = vmul.f32 %v477, 1.442695
      %v503 = vpow.pop %v502
      %v504 = vmul.f32 %v478, 1.442695
      %v505 = vpow.pop %v504
      %v506 = vmul.f32 %v479, 1.442695
      %v507 = vpow.pop %v506
      %v508 = vmul.f32 %v480, 1.442695
      %v509 = vpow.pop %v508
      %v510 = vmul.f32 %v481, 1.442695
      %v511 = vpow.pop %v510
      %v512 = vmul.f32 %v482, 1.442695
      %v513 = vpow.pop %v512
      %v514 = vmul.f32 %v483, 1.442695
      %v515 = vpow.pop %v514
      %v516 = vsub.f32 %v485, 1.0
      %v517 = vsub.f32 %v487, 1.0
      %v518 = vsub.f32 %v489, 1.0
      %v519 = vsub.f32 %v491, 1.0
      %v520 = vsub.f32 %v493, 1.0
      %v521 = vsub.f32 %v495, 1.0
      %v522 = vsub.f32 %v497, 1.0
      %v523 = vsub.f32 %v499, 1.0
      %v524 = vsub.f32 %v501, 1.0
      %v525 = vsub.f32 %v503, 1.0
      %v526 = vsub.f32 %v505, 1.0
      %v527 = vsub.f32 %v507, 1.0
      %v528 = vsub.f32 %v509, 1.0
      %v529 = vsub.f32 %v511, 1.0
      %v530 = vsub.f32 %v513, 1.0
      %v531 = vsub.f32 %v515, 1.0
      %v532 = vsel %vm452, %v405, %v516
      %v533 = vsel %vm453, %v408, %v517
      %v534 = vsel %vm454, %v411, %v518
      %v535 = vsel %vm455, %v414, %v519
      %v536 = vsel %vm456, %v417, %v520
      %v537 = vsel %vm457, %v420, %v521
      %v538 = vsel %vm458, %v423, %v522
      %v539 = vsel %vm459, %v426, %v523
      %v540 = vsel %vm460, %v429, %v524
      %v541 = vsel %vm461, %v432, %v525
      %v542 = vsel %vm462, %v435, %v526
      %v543 = vsel %vm463, %v438, %v527
      %v544 = vsel %vm464, %v441, %v528
      %v545 = vsel %vm465, %v444, %v529
      %v546 = vsel %vm466, %v447, %v530
      %v547 = vsel %vm467, %v450, %v531
      %v548 = vrot.slane %v532, 4
      %v549 = vadd.f32 %v532, %v548
      %v550 = vrot.slane %v549, 2
      %v551 = vadd.f32 %v549, %v550
      %v552 = vrot.slane %v551, 1
      %v553 = vadd.f32 %v551, %v552
      %v554 = vrot.slane %v533, 4
      %v555 = vadd.f32 %v533, %v554
      %v556 = vrot.slane %v555, 2
      %v557 = vadd.f32 %v555, %v556
      %v558 = vrot.slane %v557, 1
      %v559 = vadd.f32 %v557, %v558
      %v560 = vrot.slane %v534, 4
      %v561 = vadd.f32 %v534, %v560
      %v562 = vrot.slane %v561, 2
      %v563 = vadd.f32 %v561, %v562
      %v564 = vrot.slane %v563, 1
      %v565 = vadd.f32 %v563, %v564
      %v566 = vrot.slane %v535, 4
      %v567 = vadd.f32 %v535, %v566
      %v568 = vrot.slane %v567, 2
      %v569 = vadd.f32 %v567, %v568
      %v570 = vrot.slane %v569, 1
      %v571 = vadd.f32 %v569, %v570
      %v572 = vrot.slane %v536, 4
      %v573 = vadd.f32 %v536, %v572
      %v574 = vrot.slane %v573, 2
      %v575 = vadd.f32 %v573, %v574
      %v576 = vrot.slane %v575, 1
      %v577 = vadd.f32 %v575, %v576
      %v578 = vrot.slane %v537, 4
      %v579 = vadd.f32 %v537, %v578
      %v580 = vrot.slane %v579, 2
      %v581 = vadd.f32 %v579, %v580
      %v582 = vrot.slane %v581, 1
      %v583 = vadd.f32 %v581, %v582
      %v584 = vrot.slane %v538, 4
      %v585 = vadd.f32 %v538, %v584
      %v586 = vrot.slane %v585, 2
      %v587 = vadd.f32 %v585, %v586
      %v588 = vrot.slane %v587, 1
      %v589 = vadd.f32 %v587, %v588
      %v590 = vrot.slane %v539, 4
      %v591 = vadd.f32 %v539, %v590
      %v592 = vrot.slane %v591, 2
      %v593 = vadd.f32 %v591, %v592
      %v594 = vrot.slane %v593, 1
      %v595 = vadd.f32 %v593, %v594
      %v596 = vrot.slane %v540, 4
      %v597 = vadd.f32 %v540, %v596
      %v598 = vrot.slane %v597, 2
      %v599 = vadd.f32 %v597, %v598
      %v600 = vrot.slane %v599, 1
      %v601 = vadd.f32 %v599, %v600
      %v602 = vrot.slane %v541, 4
      %v603 = vadd.f32 %v541, %v602
      %v604 = vrot.slane %v603, 2
      %v605 = vadd.f32 %v603, %v604
      %v606 = vrot.slane %v605, 1
      %v607 = vadd.f32 %v605, %v606
      %v608 = vrot.slane %v542, 4
      %v609 = vadd.f32 %v542, %v608
      %v610 = vrot.slane %v609, 2
      %v611 = vadd.f32 %v609, %v610
      %v612 = vrot.slane %v611, 1
      %v613 = vadd.f32 %v611, %v612
      %v614 = vrot.slane %v543, 4
      %v615 = vadd.f32 %v543, %v614
      %v616 = vrot.slane %v615, 2
      %v617 = vadd.f32 %v615, %v616
      %v618 = vrot.slane %v617, 1
      %v619 = vadd.f32 %v617, %v618
      %v620 = vrot.slane %v544, 4
      %v621 = vadd.f32 %v544, %v620
      %v622 = vrot.slane %v621, 2
      %v623 = vadd.f32 %v621, %v622
      %v624 = vrot.slane %v623, 1
      %v625 = vadd.f32 %v623, %v624
      %v626 = vrot.slane %v545, 4
      %v627 = vadd.f32 %v545, %v626
      %v628 = vrot.slane %v627, 2
      %v629 = vadd.f32 %v627, %v628
      %v630 = vrot.slane %v629, 1
      %v631 = vadd.f32 %v629, %v630
      %v632 = vrot.slane %v546, 4
      %v633 = vadd.f32 %v546, %v632
      %v634 = vrot.slane %v633, 2
      %v635 = vadd.f32 %v633, %v634
      %v636 = vrot.slane %v635, 1
      %v637 = vadd.f32 %v635, %v636
      %v638 = vrot.slane %v547, 4
      %v639 = vadd.f32 %v547, %v638
      %v640 = vrot.slane %v639, 2
      %v641 = vadd.f32 %v639, %v640
      %v642 = vrot.slane %v641, 1
      %v643 = vadd.f32 %v641, %v642
      %vm660 = vcmask 1041409
      %v661 = vsel %vm660, %v559, %v553
      %vm662 = vcmask 1042434
      %v663 = vsel %vm662, %v565, %v661
      %vm664 = vcmask 1043459
      %v665 = vsel %vm664, %v571, %v663
      %vm666 = vcmask 1044484
      %v667 = vsel %vm666, %v577, %v665
      %vm668 = vcmask 1045509
      %v669 = vsel %vm668, %v583, %v667
      %vm670 = vcmask 1046534
      %v671 = vsel %vm670, %v589, %v669
      %vm672 = vcmask 1047559
      %v673 = vsel %vm672, %v595, %v671
      %v674 = vsel %vm660, %v607, %v601
      %v675 = vsel %vm662, %v613, %v674
      %v676 = vsel %vm664, %v619, %v675
      %v677 = vsel %vm666, %v625, %v676
      %v678 = vsel %vm668, %v631, %v677
      %v679 = vsel %vm670, %v637, %v678
      %v680 = vsel %vm672, %v643, %v679
      %s683 = scalar_lea.vmem [#allocation2], %s104
      %684 = vst [vmem:[%s683] sm:$0xff] %v673
      %685 = vst [vmem:[%s683 + $0x8] sm:$0xff] %v680
    $region62: #{tpu_custom_call.1} parent=1 // loop_footer
      %s102 = sadd.s32 1, %s98
    $region63: #{tpu_custom_call.1} parent=1 // loop_footer_branch
      %97 = sbr.rel target = $region59
    $region64: #{tpu_custom_call.1} parent=1 // loop_exit
      _
    %v686 = vld [vmem:[#allocation2] sm:$0xff]
    %v687 = vld [vmem:[#allocation2 + $0x8] sm:$0xff]
    %v688 = vld [vmem:[#allocation2 + $0x10] sm:$0xff]
    %v689 = vld [vmem:[#allocation2 + $0x18] sm:$0xff]
    %v690 = vld [vmem:[#allocation3] sm:$0xff]
    %v691 = vld [vmem:[#allocation3 + $0x8] sm:$0xff]
    %v692 = vld [vmem:[#allocation3 + $0x10] sm:$0xff]
    %v693 = vld [vmem:[#allocation3 + $0x18] sm:$0xff]
    %v694 = vld [vmem:[#allocation3 + $0x20] sm:$0xff]
    %v695 = vld [vmem:[#allocation3 + $0x28] sm:$0xff]
    %v696 = vld [vmem:[#allocation3 + $0x30] sm:$0xff]
    %v697 = vld [vmem:[#allocation3 + $0x38] sm:$0xff]
    %v698 = vld [vmem:[#allocation3 + $0x40] sm:$0xff]
    %v699 = vld [vmem:[#allocation3 + $0x48] sm:$0xff]
    %v700 = vld [vmem:[#allocation3 + $0x50] sm:$0xff]
    %v701 = vld [vmem:[#allocation3 + $0x58] sm:$0xff]
    %v702 = vld [vmem:[#allocation3 + $0x60] sm:$0xff]
    %v703 = vld [vmem:[#allocation3 + $0x68] sm:$0xff]
    %v704 = vld [vmem:[#allocation3 + $0x70] sm:$0xff]
    %v705 = vld [vmem:[#allocation3 + $0x78] sm:$0xff]
    %v706 = vld [vmem:[#allocation3 + $0x80] sm:$0xff]
    %v707 = vld [vmem:[#allocation3 + $0x88] sm:$0xff]
    %v708 = vld [vmem:[#allocation3 + $0x90] sm:$0xff]
    %v709 = vld [vmem:[#allocation3 + $0x98] sm:$0xff]
    %v710 = vld [vmem:[#allocation3 + $0xa0] sm:$0xff]
    %v711 = vld [vmem:[#allocation3 + $0xa8] sm:$0xff]
    %v712 = vld [vmem:[#allocation3 + $0xb0] sm:$0xff]
    %v713 = vld [vmem:[#allocation3 + $0xb8] sm:$0xff]
    %v714 = vld [vmem:[#allocation3 + $0xc0] sm:$0xff]
    %v715 = vld [vmem:[#allocation3 + $0xc8] sm:$0xff]
    %v716 = vld [vmem:[#allocation3 + $0xd0] sm:$0xff]
    %v717 = vld [vmem:[#allocation3 + $0xd8] sm:$0xff]
    %v718 = vld [vmem:[#allocation3 + $0xe0] sm:$0xff]
    %v719 = vld [vmem:[#allocation3 + $0xe8] sm:$0xff]
    %v720 = vld [vmem:[#allocation3 + $0xf0] sm:$0xff]
    %v721 = vld [vmem:[#allocation3 + $0xf8] sm:$0xff]
    %v722 = vld [vmem:[#allocation3 + $0x100] sm:$0xff]
    %v723 = vld [vmem:[#allocation3 + $0x108] sm:$0xff]
    %v724 = vld [vmem:[#allocation3 + $0x110] sm:$0xff]
    %v725 = vld [vmem:[#allocation3 + $0x118] sm:$0xff]
    %v726 = vld [vmem:[#allocation3 + $0x120] sm:$0xff]
    %v727 = vld [vmem:[#allocation3 + $0x128] sm:$0xff]
    %v728 = vld [vmem:[#allocation3 + $0x130] sm:$0xff]
    %v729 = vld [vmem:[#allocation3 + $0x138] sm:$0xff]
    %v730 = vld [vmem:[#allocation3 + $0x140] sm:$0xff]
    %v731 = vld [vmem:[#allocation3 + $0x148] sm:$0xff]
    %v732 = vld [vmem:[#allocation3 + $0x150] sm:$0xff]
    %v733 = vld [vmem:[#allocation3 + $0x158] sm:$0xff]
    %v734 = vld [vmem:[#allocation3 + $0x160] sm:$0xff]
    %v735 = vld [vmem:[#allocation3 + $0x168] sm:$0xff]
    %v736 = vld [vmem:[#allocation3 + $0x170] sm:$0xff]
    %v737 = vld [vmem:[#allocation3 + $0x178] sm:$0xff]
    %v738 = vld [vmem:[#allocation3 + $0x180] sm:$0xff]
    %v739 = vld [vmem:[#allocation3 + $0x188] sm:$0xff]
    %v740 = vld [vmem:[#allocation3 + $0x190] sm:$0xff]
    %v741 = vld [vmem:[#allocation3 + $0x198] sm:$0xff]
    %v742 = vld [vmem:[#allocation3 + $0x1a0] sm:$0xff]
    %v743 = vld [vmem:[#allocation3 + $0x1a8] sm:$0xff]
    %v744 = vld [vmem:[#allocation3 + $0x1b0] sm:$0xff]
    %v745 = vld [vmem:[#allocation3 + $0x1b8] sm:$0xff]
    %v746 = vld [vmem:[#allocation3 + $0x1c0] sm:$0xff]
    %v747 = vld [vmem:[#allocation3 + $0x1c8] sm:$0xff]
    %v748 = vld [vmem:[#allocation3 + $0x1d0] sm:$0xff]
    %v749 = vld [vmem:[#allocation3 + $0x1d8] sm:$0xff]
    %v750 = vld [vmem:[#allocation3 + $0x1e0] sm:$0xff]
    %v751 = vld [vmem:[#allocation3 + $0x1e8] sm:$0xff]
    %v752 = vld [vmem:[#allocation3 + $0x1f0] sm:$0xff]
    %v753 = vld [vmem:[#allocation3 + $0x1f8] sm:$0xff]
    %v754 = vld [vmem:[%s6] sm:$0xf]
    %v756 = vperm.slane %v754, 0
    %v757 = vperm.slane %v754, 1
    %v758 = vperm.slane %v754, 2
    %v759 = vperm.slane %v754, 3
    %764 = vmatpush.msra.mxu0 %v750
    %765 = vmatpush.msra.mxu0 %v746
    %766 = vmatpush.msra.mxu0 %v742
    %767 = vmatpush.msra.mxu0 %v738
    %768 = vmatpush.msra.mxu0 %v734
    %769 = vmatpush.msra.mxu0 %v730
    %770 = vmatpush.msra.mxu0 %v726
    %771 = vmatpush.msra.mxu0 %v722
    %772 = vmatpush.msra.mxu0 %v718
    %773 = vmatpush.msra.mxu0 %v714
    %774 = vmatpush.msra.mxu0 %v710
    %775 = vmatpush.msra.mxu0 %v706
    %776 = vmatpush.msra.mxu0 %v702
    %777 = vmatpush.msra.mxu0 %v698
    %778 = vmatpush.msra.mxu0 %v694
    %779 = vmatpush.msra.mxu0 %v690
    %780 = vmatmul.f32.gmra.mxu0 %v686
    %v781 = vpop.f32.mrf.mxu0
    %v782 = vadd.f32 %v756, %v781
    %783 = vmatmul.f32.gmra.mxu0 %v687
    %v784 = vpop.f32.mrf.mxu0
    %v785 = vadd.f32 %v756, %v784
    %786 = vmatmul.f32.gmra.mxu0 %v688
    %v787 = vpop.f32.mrf.mxu0
    %v788 = vadd.f32 %v756, %v787
    %789 = vmatmul.f32.gmra.mxu0 %v689
    %v790 = vpop.f32.mrf.mxu0
    %v791 = vadd.f32 %v756, %v790
    %792 = vdwg.mxu0
    %793 = vmatpush.msra.mxu0 %v751
    %794 = vmatpush.msra.mxu0 %v747
    %795 = vmatpush.msra.mxu0 %v743
    %796 = vmatpush.msra.mxu0 %v739
    %797 = vmatpush.msra.mxu0 %v735
    %798 = vmatpush.msra.mxu0 %v731
    %799 = vmatpush.msra.mxu0 %v727
    %800 = vmatpush.msra.mxu0 %v723
    %801 = vmatpush.msra.mxu0 %v719
    %802 = vmatpush.msra.mxu0 %v715
    %803 = vmatpush.msra.mxu0 %v711
    %804 = vmatpush.msra.mxu0 %v707
    %805 = vmatpush.msra.mxu0 %v703
    %806 = vmatpush.msra.mxu0 %v699
    %807 = vmatpush.msra.mxu0 %v695
    %808 = vmatpush.msra.mxu0 %v691
    %809 = vmatmul.f32.gmra.mxu0 %v686
    %v810 = vpop.f32.mrf.mxu0
    %v811 = vadd.f32 %v757, %v810
    %812 = vmatmul.f32.gmra.mxu0 %v687
    %v813 = vpop.f32.mrf.mxu0
    %v814 = vadd.f32 %v757, %v813
    %815 = vmatmul.f32.gmra.mxu0 %v688
    %v816 = vpop.f32.mrf.mxu0
    %v817 = vadd.f32 %v757, %v816
    %818 = vmatmul.f32.gmra.mxu0 %v689
    %v819 = vpop.f32.mrf.mxu0
    %v820 = vadd.f32 %v757, %v819
    %821 = vdwg.mxu0
    %822 = vmatpush.msra.mxu0 %v752
    %823 = vmatpush.msra.mxu0 %v748
    %824 = vmatpush.msra.mxu0 %v744
    %825 = vmatpush.msra.mxu0 %v740
    %826 = vmatpush.msra.mxu0 %v736
    %827 = vmatpush.msra.mxu0 %v732
    %828 = vmatpush.msra.mxu0 %v728
    %829 = vmatpush.msra.mxu0 %v724
    %830 = vmatpush.msra.mxu0 %v720
    %831 = vmatpush.msra.mxu0 %v716
    %832 = vmatpush.msra.mxu0 %v712
    %833 = vmatpush.msra.mxu0 %v708
    %834 = vmatpush.msra.mxu0 %v704
    %835 = vmatpush.msra.mxu0 %v700
    %836 = vmatpush.msra.mxu0 %v696
    %837 = vmatpush.msra.mxu0 %v692
    %838 = vmatmul.f32.gmra.mxu0 %v686
    %v839 = vpop.f32.mrf.mxu0
    %v840 = vadd.f32 %v758, %v839
    %841 = vmatmul.f32.gmra.mxu0 %v687
    %v842 = vpop.f32.mrf.mxu0
    %v843 = vadd.f32 %v758, %v842
    %844 = vmatmul.f32.gmra.mxu0 %v688
    %v845 = vpop.f32.mrf.mxu0
    %v846 = vadd.f32 %v758, %v845
    %847 = vmatmul.f32.gmra.mxu0 %v689
    %v848 = vpop.f32.mrf.mxu0
    %v849 = vadd.f32 %v758, %v848
    %850 = vdwg.mxu0
    %851 = vmatpush.msra.mxu0 %v753
    %852 = vmatpush.msra.mxu0 %v749
    %853 = vmatpush.msra.mxu0 %v745
    %854 = vmatpush.msra.mxu0 %v741
    %855 = vmatpush.msra.mxu0 %v737
    %856 = vmatpush.msra.mxu0 %v733
    %857 = vmatpush.msra.mxu0 %v729
    %858 = vmatpush.msra.mxu0 %v725
    %859 = vmatpush.msra.mxu0 %v721
    %860 = vmatpush.msra.mxu0 %v717
    %861 = vmatpush.msra.mxu0 %v713
    %862 = vmatpush.msra.mxu0 %v709
    %863 = vmatpush.msra.mxu0 %v705
    %864 = vmatpush.msra.mxu0 %v701
    %865 = vmatpush.msra.mxu0 %v697
    %866 = vmatpush.msra.mxu0 %v693
    %867 = vmatmul.f32.gmra.mxu0 %v686
    %v868 = vpop.f32.mrf.mxu0
    %v869 = vadd.f32 %v759, %v868
    %870 = vmatmul.f32.gmra.mxu0 %v687
    %v871 = vpop.f32.mrf.mxu0
    %v872 = vadd.f32 %v759, %v871
    %873 = vmatmul.f32.gmra.mxu0 %v688
    %v874 = vpop.f32.mrf.mxu0
    %v875 = vadd.f32 %v759, %v874
    %876 = vmatmul.f32.gmra.mxu0 %v689
    %v877 = vpop.f32.mrf.mxu0
    %v878 = vadd.f32 %v759, %v877
    %879 = vdwg.mxu0
    %vm880 = vcmp.gt.f32.partialorder %v782, 0.0
    %vm881 = vcmp.gt.f32.partialorder %v811, 0.0
    %vm882 = vcmp.gt.f32.partialorder %v840, 0.0
    %vm883 = vcmp.gt.f32.partialorder %v869, 0.0
    %vm884 = vcmp.gt.f32.partialorder %v785, 0.0
    %vm885 = vcmp.gt.f32.partialorder %v814, 0.0
    %vm886 = vcmp.gt.f32.partialorder %v843, 0.0
    %vm887 = vcmp.gt.f32.partialorder %v872, 0.0
    %vm888 = vcmp.gt.f32.partialorder %v788, 0.0
    %vm889 = vcmp.gt.f32.partialorder %v817, 0.0
    %vm890 = vcmp.gt.f32.partialorder %v846, 0.0
    %vm891 = vcmp.gt.f32.partialorder %v875, 0.0
    %vm892 = vcmp.gt.f32.partialorder %v791, 0.0
    %vm893 = vcmp.gt.f32.partialorder %v820, 0.0
    %vm894 = vcmp.gt.f32.partialorder %v849, 0.0
    %vm895 = vcmp.gt.f32.partialorder %v878, 0.0
    %v896 = vmin.f32 %v782, 0.0
    %v897 = vmin.f32 %v811, 0.0
    %v898 = vmin.f32 %v840, 0.0
    %v899 = vmin.f32 %v869, 0.0
    %v900 = vmin.f32 %v785, 0.0
    %v901 = vmin.f32 %v814, 0.0
    %v902 = vmin.f32 %v843, 0.0
    %v903 = vmin.f32 %v872, 0.0
    %v904 = vmin.f32 %v788, 0.0
    %v905 = vmin.f32 %v817, 0.0
    %v906 = vmin.f32 %v846, 0.0
    %v907 = vmin.f32 %v875, 0.0
    %v908 = vmin.f32 %v791, 0.0
    %v909 = vmin.f32 %v820, 0.0
    %v910 = vmin.f32 %v849, 0.0
    %v911 = vmin.f32 %v878, 0.0
    %v912 = vmul.f32 %v896, 1.442695
    %v913 = vpow.pop %v912
    %v914 = vmul.f32 %v897, 1.442695
    %v915 = vpow.pop %v914
    %v916 = vmul.f32 %v898, 1.442695
    %v917 = vpow.pop %v916
    %v918 = vmul.f32 %v899, 1.442695
    %v919 = vpow.pop %v918
    %v920 = vmul.f32 %v900, 1.442695
    %v921 = vpow.pop %v920
    %v922 = vmul.f32 %v901, 1.442695
    %v923 = vpow.pop %v922
    %v924 = vmul.f32 %v902, 1.442695
    %v925 = vpow.pop %v924
    %v926 = vmul.f32 %v903, 1.442695
    %v927 = vpow.pop %v926
    %v928 = vmul.f32 %v904, 1.442695
    %v929 = vpow.pop %v928
    %v930 = vmul.f32 %v905, 1.442695
    %v931 = vpow.pop %v930
    %v932 = vmul.f32 %v906, 1.442695
    %v933 = vpow.pop %v932
    %v934 = vmul.f32 %v907, 1.442695
    %v935 = vpow.pop %v934
    %v936 = vmul.f32 %v908, 1.442695
    %v937 = vpow.pop %v936
    %v938 = vmul.f32 %v909, 1.442695
    %v939 = vpow.pop %v938
    %v940 = vmul.f32 %v910, 1.442695
    %v941 = vpow.pop %v940
    %v942 = vmul.f32 %v911, 1.442695
    %v943 = vpow.pop %v942
    %v944 = vsub.f32 %v913, 1.0
    %v945 = vsub.f32 %v915, 1.0
    %v946 = vsub.f32 %v917, 1.0
    %v947 = vsub.f32 %v919, 1.0
    %v948 = vsub.f32 %v921, 1.0
    %v949 = vsub.f32 %v923, 1.0
    %v950 = vsub.f32 %v925, 1.0
    %v951 = vsub.f32 %v927, 1.0
    %v952 = vsub.f32 %v929, 1.0
    %v953 = vsub.f32 %v931, 1.0
    %v954 = vsub.f32 %v933, 1.0
    %v955 = vsub.f32 %v935, 1.0
    %v956 = vsub.f32 %v937, 1.0
    %v957 = vsub.f32 %v939, 1.0
    %v958 = vsub.f32 %v941, 1.0
    %v959 = vsub.f32 %v943, 1.0
    %v960 = vsel %vm880, %v782, %v944
    %v961 = vsel %vm881, %v811, %v945
    %v962 = vsel %vm882, %v840, %v946
    %v963 = vsel %vm883, %v869, %v947
    %v964 = vsel %vm884, %v785, %v948
    %v965 = vsel %vm885, %v814, %v949
    %v966 = vsel %vm886, %v843, %v950
    %v967 = vsel %vm887, %v872, %v951
    %v968 = vsel %vm888, %v788, %v952
    %v969 = vsel %vm889, %v817, %v953
    %v970 = vsel %vm890, %v846, %v954
    %v971 = vsel %vm891, %v875, %v955
    %v972 = vsel %vm892, %v791, %v956
    %v973 = vsel %vm893, %v820, %v957
    %v974 = vsel %vm894, %v849, %v958
    %v975 = vsel %vm895, %v878, %v959
    %v976 = vld [vmem:[#allocation6] sm:$0xff]
    %v977 = vld [vmem:[#allocation6 + $0x8] sm:$0xff]
    %v978 = vld [vmem:[#allocation6 + $0x10] sm:$0xff]
    %v979 = vld [vmem:[#allocation6 + $0x18] sm:$0xff]
    %v980 = vld [vmem:[#allocation6 + $0x20] sm:$0xff]
    %v981 = vld [vmem:[#allocation6 + $0x28] sm:$0xff]
    %v982 = vld [vmem:[#allocation6 + $0x30] sm:$0xff]
    %v983 = vld [vmem:[#allocation6 + $0x38] sm:$0xff]
    %v984 = vld [vmem:[#allocation6 + $0x40] sm:$0xff]
    %v985 = vld [vmem:[#allocation6 + $0x48] sm:$0xff]
    %v986 = vld [vmem:[#allocation6 + $0x50] sm:$0xff]
    %v987 = vld [vmem:[#allocation6 + $0x58] sm:$0xff]
    %v988 = vld [vmem:[#allocation6 + $0x60] sm:$0xff]
    %v989 = vld [vmem:[#allocation6 + $0x68] sm:$0xff]
    %v990 = vld [vmem:[#allocation6 + $0x70] sm:$0xff]
    %v991 = vld [vmem:[#allocation6 + $0x78] sm:$0xff]
    %v992 = vld [vmem:[#allocation6 + $0x80] sm:$0xff]
    %v993 = vld [vmem:[#allocation6 + $0x88] sm:$0xff]
    %v994 = vld [vmem:[#allocation6 + $0x90] sm:$0xff]
    %v995 = vld [vmem:[#allocation6 + $0x98] sm:$0xff]
    %v996 = vld [vmem:[#allocation6 + $0xa0] sm:$0xff]
    %v997 = vld [vmem:[#allocation6 + $0xa8] sm:$0xff]
    %v998 = vld [vmem:[#allocation6 + $0xb0] sm:$0xff]
    %v999 = vld [vmem:[#allocation6 + $0xb8] sm:$0xff]
    %v1000 = vld [vmem:[#allocation6 + $0xc0] sm:$0xff]
    %v1001 = vld [vmem:[#allocation6 + $0xc8] sm:$0xff]
    %v1002 = vld [vmem:[#allocation6 + $0xd0] sm:$0xff]
    %v1003 = vld [vmem:[#allocation6 + $0xd8] sm:$0xff]
    %v1004 = vld [vmem:[#allocation6 + $0xe0] sm:$0xff]
    %v1005 = vld [vmem:[#allocation6 + $0xe8] sm:$0xff]
    %v1006 = vld [vmem:[#allocation6 + $0xf0] sm:$0xff]
    %v1007 = vld [vmem:[#allocation6 + $0xf8] sm:$0xff]
    %v1008 = vld [vmem:[#allocation6 + $0x100] sm:$0xff]
    %v1009 = vld [vmem:[#allocation6 + $0x108] sm:$0xff]
    %v1010 = vld [vmem:[#allocation6 + $0x110] sm:$0xff]
    %v1011 = vld [vmem:[#allocation6 + $0x118] sm:$0xff]
    %v1012 = vld [vmem:[#allocation6 + $0x120] sm:$0xff]
    %v1013 = vld [vmem:[#allocation6 + $0x128] sm:$0xff]
    %v1014 = vld [vmem:[#allocation6 + $0x130] sm:$0xff]
    %v1015 = vld [vmem:[#allocation6 + $0x138] sm:$0xff]
    %v1016 = vld [vmem:[#allocation6 + $0x140] sm:$0xff]
    %v1017 = vld [vmem:[#allocation6 + $0x148] sm:$0xff]
    %v1018 = vld [vmem:[#allocation6 + $0x150] sm:$0xff]
    %v1019 = vld [vmem:[#allocation6 + $0x158] sm:$0xff]
    %v1020 = vld [vmem:[#allocation6 + $0x160] sm:$0xff]
    %v1021 = vld [vmem:[#allocation6 + $0x168] sm:$0xff]
    %v1022 = vld [vmem:[#allocation6 + $0x170] sm:$0xff]
    %v1023 = vld [vmem:[#allocation6 + $0x178] sm:$0xff]
    %v1024 = vld [vmem:[#allocation6 + $0x180] sm:$0xff]
    %v1025 = vld [vmem:[#allocation6 + $0x188] sm:$0xff]
    %v1026 = vld [vmem:[#allocation6 + $0x190] sm:$0xff]
    %v1027 = vld [vmem:[#allocation6 + $0x198] sm:$0xff]
    %v1028 = vld [vmem:[#allocation6 + $0x1a0] sm:$0xff]
    %v1029 = vld [vmem:[#allocation6 + $0x1a8] sm:$0xff]
    %v1030 = vld [vmem:[#allocation6 + $0x1b0] sm:$0xff]
    %v1031 = vld [vmem:[#allocation6 + $0x1b8] sm:$0xff]
    %v1032 = vld [vmem:[#allocation6 + $0x1c0] sm:$0xff]
    %v1033 = vld [vmem:[#allocation6 + $0x1c8] sm:$0xff]
    %v1034 = vld [vmem:[#allocation6 + $0x1d0] sm:$0xff]
    %v1035 = vld [vmem:[#allocation6 + $0x1d8] sm:$0xff]
    %v1036 = vld [vmem:[#allocation6 + $0x1e0] sm:$0xff]
    %v1037 = vld [vmem:[#allocation6 + $0x1e8] sm:$0xff]
    %v1038 = vld [vmem:[#allocation6 + $0x1f0] sm:$0xff]
    %v1039 = vld [vmem:[#allocation6 + $0x1f8] sm:$0xff]
    %v1040 = vld [vmem:[%s8] sm:$0x3]
    %v1042 = vperm.slane %v1040, 0
    %v1043 = vperm.slane %v1040, 1
    %1046 = vmatpush.msra.mxu0 %v1006
    %1047 = vmatpush.msra.mxu0 %v1004
    %1048 = vmatpush.msra.mxu0 %v1002
    %1049 = vmatpush.msra.mxu0 %v1000
    %1050 = vmatpush.msra.mxu0 %v998
    %1051 = vmatpush.msra.mxu0 %v996
    %1052 = vmatpush.msra.mxu0 %v994
    %1053 = vmatpush.msra.mxu0 %v992
    %1054 = vmatpush.msra.mxu0 %v990
    %1055 = vmatpush.msra.mxu0 %v988
    %1056 = vmatpush.msra.mxu0 %v986
    %1057 = vmatpush.msra.mxu0 %v984
    %1058 = vmatpush.msra.mxu0 %v982
    %1059 = vmatpush.msra.mxu0 %v980
    %1060 = vmatpush.msra.mxu0 %v978
    %1061 = vmatpush.msra.mxu0 %v976
    %1062 = vmatmul.f32.gmra.mxu0 %v960
    %v1063 = vpop.f32.mrf.mxu0
    %v1064 = vadd.f32 %v1042, %v1063
    %1065 = vmatmul.f32.gmra.mxu0 %v964
    %v1066 = vpop.f32.mrf.mxu0
    %v1067 = vadd.f32 %v1042, %v1066
    %1068 = vmatmul.f32.gmra.mxu0 %v968
    %v1069 = vpop.f32.mrf.mxu0
    %v1070 = vadd.f32 %v1042, %v1069
    %1071 = vmatmul.f32.gmra.mxu0 %v972
    %v1072 = vpop.f32.mrf.mxu0
    %v1073 = vadd.f32 %v1042, %v1072
    %1074 = vdwg.mxu0
    %1075 = vmatpush.msra.mxu0 %v1038
    %1076 = vmatpush.msra.mxu0 %v1036
    %1077 = vmatpush.msra.mxu0 %v1034
    %1078 = vmatpush.msra.mxu0 %v1032
    %1079 = vmatpush.msra.mxu0 %v1030
    %1080 = vmatpush.msra.mxu0 %v1028
    %1081 = vmatpush.msra.mxu0 %v1026
    %1082 = vmatpush.msra.mxu0 %v1024
    %1083 = vmatpush.msra.mxu0 %v1022
    %1084 = vmatpush.msra.mxu0 %v1020
    %1085 = vmatpush.msra.mxu0 %v1018
    %1086 = vmatpush.msra.mxu0 %v1016
    %1087 = vmatpush.msra.mxu0 %v1014
    %1088 = vmatpush.msra.mxu0 %v1012
    %1089 = vmatpush.msra.mxu0 %v1010
    %1090 = vmatpush.msra.mxu0 %v1008
    %1091 = vmatmul.f32.gmra.mxu0 %v961
    %v1092 = vpop.f32.mrf.mxu0
    %v1093 = vadd.f32 %v1064, %v1092
    %1094 = vmatmul.f32.gmra.mxu0 %v965
    %v1095 = vpop.f32.mrf.mxu0
    %v1096 = vadd.f32 %v1067, %v1095
    %1097 = vmatmul.f32.gmra.mxu0 %v969
    %v1098 = vpop.f32.mrf.mxu0
    %v1099 = vadd.f32 %v1070, %v1098
    %1100 = vmatmul.f32.gmra.mxu0 %v973
    %v1101 = vpop.f32.mrf.mxu0
    %v1102 = vadd.f32 %v1073, %v1101
    %1103 = vdwg.mxu0
    %1104 = vmatpush.msra.mxu0 %v1007
    %1105 = vmatpush.msra.mxu0 %v1005
    %1106 = vmatpush.msra.mxu0 %v1003
    %1107 = vmatpush.msra.mxu0 %v1001
    %1108 = vmatpush.msra.mxu0 %v999
    %1109 = vmatpush.msra.mxu0 %v997
    %1110 = vmatpush.msra.mxu0 %v995
    %1111 = vmatpush.msra.mxu0 %v993
    %1112 = vmatpush.msra.mxu0 %v991
    %1113 = vmatpush.msra.mxu0 %v989
    %1114 = vmatpush.msra.mxu0 %v987
    %1115 = vmatpush.msra.mxu0 %v985
    %1116 = vmatpush.msra.mxu0 %v983
    %1117 = vmatpush.msra.mxu0 %v981
    %1118 = vmatpush.msra.mxu0 %v979
    %1119 = vmatpush.msra.mxu0 %v977
    %1120 = vmatmul.f32.gmra.mxu0 %v960
    %v1121 = vpop.f32.mrf.mxu0
    %v1122 = vadd.f32 %v1043, %v1121
    %1123 = vmatmul.f32.gmra.mxu0 %v964
    %v1124 = vpop.f32.mrf.mxu0
    %v1125 = vadd.f32 %v1043, %v1124
    %1126 = vmatmul.f32.gmra.mxu0 %v968
    %v1127 = vpop.f32.mrf.mxu0
    %v1128 = vadd.f32 %v1043, %v1127
    %1129 = vmatmul.f32.gmra.mxu0 %v972
    %v1130 = vpop.f32.mrf.mxu0
    %v1131 = vadd.f32 %v1043, %v1130
    %1132 = vdwg.mxu0
    %1133 = vmatpush.msra.mxu0 %v1039
    %1134 = vmatpush.msra.mxu0 %v1037
    %1135 = vmatpush.msra.mxu0 %v1035
    %1136 = vmatpush.msra.mxu0 %v1033
    %1137 = vmatpush.msra.mxu0 %v1031
    %1138 = vmatpush.msra.mxu0 %v1029
    %1139 = vmatpush.msra.mxu0 %v1027
    %1140 = vmatpush.msra.mxu0 %v1025
    %1141 = vmatpush.msra.mxu0 %v1023
    %1142 = vmatpush.msra.mxu0 %v1021
    %1143 = vmatpush.msra.mxu0 %v1019
    %1144 = vmatpush.msra.mxu0 %v1017
    %1145 = vmatpush.msra.mxu0 %v1015
    %1146 = vmatpush.msra.mxu0 %v1013
    %1147 = vmatpush.msra.mxu0 %v1011
    %1148 = vmatpush.msra.mxu0 %v1009
    %1149 = vmatmul.f32.gmra.mxu0 %v961
    %v1150 = vpop.f32.mrf.mxu0
    %v1151 = vadd.f32 %v1122, %v1150
    %1152 = vmatmul.f32.gmra.mxu0 %v965
    %v1153 = vpop.f32.mrf.mxu0
    %v1154 = vadd.f32 %v1125, %v1153
    %1155 = vmatmul.f32.gmra.mxu0 %v969
    %v1156 = vpop.f32.mrf.mxu0
    %v1157 = vadd.f32 %v1128, %v1156
    %1158 = vmatmul.f32.gmra.mxu0 %v973
    %v1159 = vpop.f32.mrf.mxu0
    %v1160 = vadd.f32 %v1131, %v1159
    %1161 = vdwg.mxu0
    %vm1162 = vcmp.gt.f32.partialorder %v1093, 0.0
    %vm1163 = vcmp.gt.f32.partialorder %v1151, 0.0
    %vm1164 = vcmp.gt.f32.partialorder %v1096, 0.0
    %vm1165 = vcmp.gt.f32.partialorder %v1154, 0.0
    %vm1166 = vcmp.gt.f32.partialorder %v1099, 0.0
    %vm1167 = vcmp.gt.f32.partialorder %v1157, 0.0
    %vm1168 = vcmp.gt.f32.partialorder %v1102, 0.0
    %vm1169 = vcmp.gt.f32.partialorder %v1160, 0.0
    %v1170 = vmin.f32 %v1093, 0.0
    %v1171 = vmin.f32 %v1151, 0.0
    %v1172 = vmin.f32 %v1096, 0.0
    %v1173 = vmin.f32 %v1154, 0.0
    %v1174 = vmin.f32 %v1099, 0.0
    %v1175 = vmin.f32 %v1157, 0.0
    %v1176 = vmin.f32 %v1102, 0.0
    %v1177 = vmin.f32 %v1160, 0.0
    %v1178 = vmul.f32 %v1170, 1.442695
    %v1179 = vpow.pop %v1178
    %v1180 = vmul.f32 %v1171, 1.442695
    %v1181 = vpow.pop %v1180
    %v1182 = vmul.f32 %v1172, 1.442695
    %v1183 = vpow.pop %v1182
    %v1184 = vmul.f32 %v1173, 1.442695
    %v1185 = vpow.pop %v1184
    %v1186 = vmul.f32 %v1174, 1.442695
    %v1187 = vpow.pop %v1186
    %v1188 = vmul.f32 %v1175, 1.442695
    %v1189 = vpow.pop %v1188
    %v1190 = vmul.f32 %v1176, 1.442695
    %v1191 = vpow.pop %v1190
    %v1192 = vmul.f32 %v1177, 1.442695
    %v1193 = vpow.pop %v1192
    %v1194 = vsub.f32 %v1179, 1.0
    %v1195 = vsub.f32 %v1181, 1.0
    %v1196 = vsub.f32 %v1183, 1.0
    %v1197 = vsub.f32 %v1185, 1.0
    %v1198 = vsub.f32 %v1187, 1.0
    %v1199 = vsub.f32 %v1189, 1.0
    %v1200 = vsub.f32 %v1191, 1.0
    %v1201 = vsub.f32 %v1193, 1.0
    %v1202 = vsel %vm1162, %v1093, %v1194
    %v1203 = vsel %vm1163, %v1151, %v1195
    %v1204 = vsel %vm1164, %v1096, %v1196
    %v1205 = vsel %vm1165, %v1154, %v1197
    %v1206 = vsel %vm1166, %v1099, %v1198
    %v1207 = vsel %vm1167, %v1157, %v1199
    %v1208 = vsel %vm1168, %v1102, %v1200
    %v1209 = vsel %vm1169, %v1160, %v1201
    %v1210 = vld [vmem:[#allocation8] sm:$0xff]
    %v1211 = vld [vmem:[#allocation8 + $0x8] sm:$0xff]
    %v1212 = vld [vmem:[#allocation8 + $0x10] sm:$0xff]
    %v1213 = vld [vmem:[#allocation8 + $0x18] sm:$0xff]
    %v1214 = vld [vmem:[#allocation8 + $0x20] sm:$0xff]
    %v1215 = vld [vmem:[#allocation8 + $0x28] sm:$0xff]
    %v1216 = vld [vmem:[#allocation8 + $0x30] sm:$0xff]
    %v1217 = vld [vmem:[#allocation8 + $0x38] sm:$0xff]
    %v1218 = vld [vmem:[#allocation8 + $0x40] sm:$0xff]
    %v1219 = vld [vmem:[#allocation8 + $0x48] sm:$0xff]
    %v1220 = vld [vmem:[#allocation8 + $0x50] sm:$0xff]
    %v1221 = vld [vmem:[#allocation8 + $0x58] sm:$0xff]
    %v1222 = vld [vmem:[#allocation8 + $0x60] sm:$0xff]
    %v1223 = vld [vmem:[#allocation8 + $0x68] sm:$0xff]
    %v1224 = vld [vmem:[#allocation8 + $0x70] sm:$0xff]
    %v1225 = vld [vmem:[#allocation8 + $0x78] sm:$0xff]
    %v1226 = vld [vmem:[#allocation8 + $0x80] sm:$0xff]
    %v1227 = vld [vmem:[#allocation8 + $0x88] sm:$0xff]
    %v1228 = vld [vmem:[#allocation8 + $0x90] sm:$0xff]
    %v1229 = vld [vmem:[#allocation8 + $0x98] sm:$0xff]
    %v1230 = vld [vmem:[#allocation8 + $0xa0] sm:$0xff]
    %v1231 = vld [vmem:[#allocation8 + $0xa8] sm:$0xff]
    %v1232 = vld [vmem:[#allocation8 + $0xb0] sm:$0xff]
    %v1233 = vld [vmem:[#allocation8 + $0xb8] sm:$0xff]
    %v1234 = vld [vmem:[#allocation8 + $0xc0] sm:$0xff]
    %v1235 = vld [vmem:[#allocation8 + $0xc8] sm:$0xff]
    %v1236 = vld [vmem:[#allocation8 + $0xd0] sm:$0xff]
    %v1237 = vld [vmem:[#allocation8 + $0xd8] sm:$0xff]
    %v1238 = vld [vmem:[#allocation8 + $0xe0] sm:$0xff]
    %v1239 = vld [vmem:[#allocation8 + $0xe8] sm:$0xff]
    %v1240 = vld [vmem:[#allocation8 + $0xf0] sm:$0xff]
    %v1241 = vld [vmem:[#allocation8 + $0xf8] sm:$0xff]
    %v1242 = vld [vmem:[%s10] sm:$0x1]
    %v1244 = vperm.slane %v1242, 0
    %1246 = vmatpush.msra.mxu0 %v1225
    %1247 = vmatpush.msra.mxu0 %v1224
    %1248 = vmatpush.msra.mxu0 %v1223
    %1249 = vmatpush.msra.mxu0 %v1222
    %1250 = vmatpush.msra.mxu0 %v1221
    %1251 = vmatpush.msra.mxu0 %v1220
    %1252 = vmatpush.msra.mxu0 %v1219
    %1253 = vmatpush.msra.mxu0 %v1218
    %1254 = vmatpush.msra.mxu0 %v1217
    %1255 = vmatpush.msra.mxu0 %v1216
    %1256 = vmatpush.msra.mxu0 %v1215
    %1257 = vmatpush.msra.mxu0 %v1214
    %1258 = vmatpush.msra.mxu0 %v1213
    %1259 = vmatpush.msra.mxu0 %v1212
    %1260 = vmatpush.msra.mxu0 %v1211
    %1261 = vmatpush.msra.mxu0 %v1210
    %1262 = vmatmul.f32.gmra.mxu0 %v1202
    %v1263 = vpop.f32.mrf.mxu0
    %v1264 = vadd.f32 %v1244, %v1263
    %1265 = vmatmul.f32.gmra.mxu0 %v1204
    %v1266 = vpop.f32.mrf.mxu0
    %v1267 = vadd.f32 %v1244, %v1266
    %1268 = vmatmul.f32.gmra.mxu0 %v1206
    %v1269 = vpop.f32.mrf.mxu0
    %v1270 = vadd.f32 %v1244, %v1269
    %1271 = vmatmul.f32.gmra.mxu0 %v1208
    %v1272 = vpop.f32.mrf.mxu0
    %v1273 = vadd.f32 %v1244, %v1272
    %1274 = vdwg.mxu0
    %1275 = vmatpush.msra.mxu0 %v1241
    %1276 = vmatpush.msra.mxu0 %v1240
    %1277 = vmatpush.msra.mxu0 %v1239
    %1278 = vmatpush.msra.mxu0 %v1238
    %1279 = vmatpush.msra.mxu0 %v1237
    %1280 = vmatpush.msra.mxu0 %v1236
    %1281 = vmatpush.msra.mxu0 %v1235
    %1282 = vmatpush.msra.mxu0 %v1234
    %1283 = vmatpush.msra.mxu0 %v1233
    %1284 = vmatpush.msra.mxu0 %v1232
    %1285 = vmatpush.msra.mxu0 %v1231
    %1286 = vmatpush.msra.mxu0 %v1230
    %1287 = vmatpush.msra.mxu0 %v1229
    %1288 = vmatpush.msra.mxu0 %v1228
    %1289 = vmatpush.msra.mxu0 %v1227
    %1290 = vmatpush.msra.mxu0 %v1226
    %1291 = vmatmul.f32.gmra.mxu0 %v1203
    %v1292 = vpop.f32.mrf.mxu0
    %v1293 = vadd.f32 %v1264, %v1292
    %1294 = vmatmul.f32.gmra.mxu0 %v1205
    %v1295 = vpop.f32.mrf.mxu0
    %v1296 = vadd.f32 %v1267, %v1295
    %1297 = vmatmul.f32.gmra.mxu0 %v1207
    %v1298 = vpop.f32.mrf.mxu0
    %v1299 = vadd.f32 %v1270, %v1298
    %1300 = vmatmul.f32.gmra.mxu0 %v1209
    %v1301 = vpop.f32.mrf.mxu0
    %v1302 = vadd.f32 %v1273, %v1301
    %1303 = vdwg.mxu0
    %s1304 = scalar_lea.vmem [#allocation6], 512
    %v1305 = vld [vmem:[%s1304] sm:$0xff]
    %v1306 = vld [vmem:[%s1304 + $0x8] sm:$0xff]
    %v1307 = vld [vmem:[%s1304 + $0x10] sm:$0xff]
    %v1308 = vld [vmem:[%s1304 + $0x18] sm:$0xff]
    %v1309 = vld [vmem:[%s1304 + $0x20] sm:$0xff]
    %v1310 = vld [vmem:[%s1304 + $0x28] sm:$0xff]
    %v1311 = vld [vmem:[%s1304 + $0x30] sm:$0xff]
    %v1312 = vld [vmem:[%s1304 + $0x38] sm:$0xff]
    %v1313 = vld [vmem:[%s1304 + $0x40] sm:$0xff]
    %v1314 = vld [vmem:[%s1304 + $0x48] sm:$0xff]
    %v1315 = vld [vmem:[%s1304 + $0x50] sm:$0xff]
    %v1316 = vld [vmem:[%s1304 + $0x58] sm:$0xff]
    %v1317 = vld [vmem:[%s1304 + $0x60] sm:$0xff]
    %v1318 = vld [vmem:[%s1304 + $0x68] sm:$0xff]
    %v1319 = vld [vmem:[%s1304 + $0x70] sm:$0xff]
    %v1320 = vld [vmem:[%s1304 + $0x78] sm:$0xff]
    %v1321 = vld [vmem:[%s1304 + $0x80] sm:$0xff]
    %v1322 = vld [vmem:[%s1304 + $0x88] sm:$0xff]
    %v1323 = vld [vmem:[%s1304 + $0x90] sm:$0xff]
    %v1324 = vld [vmem:[%s1304 + $0x98] sm:$0xff]
    %v1325 = vld [vmem:[%s1304 + $0xa0] sm:$0xff]
    %v1326 = vld [vmem:[%s1304 + $0xa8] sm:$0xff]
    %v1327 = vld [vmem:[%s1304 + $0xb0] sm:$0xff]
    %v1328 = vld [vmem:[%s1304 + $0xb8] sm:$0xff]
    %v1329 = vld [vmem:[%s1304 + $0xc0] sm:$0xff]
    %v1330 = vld [vmem:[%s1304 + $0xc8] sm:$0xff]
    %v1331 = vld [vmem:[%s1304 + $0xd0] sm:$0xff]
    %v1332 = vld [vmem:[%s1304 + $0xd8] sm:$0xff]
    %v1333 = vld [vmem:[%s1304 + $0xe0] sm:$0xff]
    %v1334 = vld [vmem:[%s1304 + $0xe8] sm:$0xff]
    %v1335 = vld [vmem:[%s1304 + $0xf0] sm:$0xff]
    %v1336 = vld [vmem:[%s1304 + $0xf8] sm:$0xff]
    %v1337 = vld [vmem:[%s1304 + $0x100] sm:$0xff]
    %v1338 = vld [vmem:[%s1304 + $0x108] sm:$0xff]
    %v1339 = vld [vmem:[%s1304 + $0x110] sm:$0xff]
    %v1340 = vld [vmem:[%s1304 + $0x118] sm:$0xff]
    %v1341 = vld [vmem:[%s1304 + $0x120] sm:$0xff]
    %v1342 = vld [vmem:[%s1304 + $0x128] sm:$0xff]
    %v1343 = vld [vmem:[%s1304 + $0x130] sm:$0xff]
    %v1344 = vld [vmem:[%s1304 + $0x138] sm:$0xff]
    %v1345 = vld [vmem:[%s1304 + $0x140] sm:$0xff]
    %v1346 = vld [vmem:[%s1304 + $0x148] sm:$0xff]
    %v1347 = vld [vmem:[%s1304 + $0x150] sm:$0xff]
    %v1348 = vld [vmem:[%s1304 + $0x158] sm:$0xff]
    %v1349 = vld [vmem:[%s1304 + $0x160] sm:$0xff]
    %v1350 = vld [vmem:[%s1304 + $0x168] sm:$0xff]
    %v1351 = vld [vmem:[%s1304 + $0x170] sm:$0xff]
    %v1352 = vld [vmem:[%s1304 + $0x178] sm:$0xff]
    %v1353 = vld [vmem:[%s1304 + $0x180] sm:$0xff]
    %v1354 = vld [vmem:[%s1304 + $0x188] sm:$0xff]
    %v1355 = vld [vmem:[%s1304 + $0x190] sm:$0xff]
    %v1356 = vld [vmem:[%s1304 + $0x198] sm:$0xff]
    %v1357 = vld [vmem:[%s1304 + $0x1a0] sm:$0xff]
    %v1358 = vld [vmem:[%s1304 + $0x1a8] sm:$0xff]
    %v1359 = vld [vmem:[%s1304 + $0x1b0] sm:$0xff]
    %v1360 = vld [vmem:[%s1304 + $0x1b8] sm:$0xff]
    %v1361 = vld [vmem:[%s1304 + $0x1c0] sm:$0xff]
    %v1362 = vld [vmem:[%s1304 + $0x1c8] sm:$0xff]
    %v1363 = vld [vmem:[%s1304 + $0x1d0] sm:$0xff]
    %v1364 = vld [vmem:[%s1304 + $0x1d8] sm:$0xff]
    %v1365 = vld [vmem:[%s1304 + $0x1e0] sm:$0xff]
    %v1366 = vld [vmem:[%s1304 + $0x1e8] sm:$0xff]
    %v1367 = vld [vmem:[%s1304 + $0x1f0] sm:$0xff]
    %v1368 = vld [vmem:[%s1304 + $0x1f8] sm:$0xff]
    %s1369 = scalar_lea.vmem %s8, 2
    %v1370 = vld [vmem:[%s1369] sm:$0x3]
    %v1372 = vperm.slane %v1370, 0
    %v1373 = vperm.slane %v1370, 1
    %1376 = vmatpush.msra.mxu0 %v1335
    %1377 = vmatpush.msra.mxu0 %v1333
    %1378 = vmatpush.msra.mxu0 %v1331
    %1379 = vmatpush.msra.mxu0 %v1329
    %1380 = vmatpush.msra.mxu0 %v1327
    %1381 = vmatpush.msra.mxu0 %v1325
    %1382 = vmatpush.msra.mxu0 %v1323
    %1383 = vmatpush.msra.mxu0 %v1321
    %1384 = vmatpush.msra.mxu0 %v1319
    %1385 = vmatpush.msra.mxu0 %v1317
    %1386 = vmatpush.msra.mxu0 %v1315
    %1387 = vmatpush.msra.mxu0 %v1313
    %1388 = vmatpush.msra.mxu0 %v1311
    %1389 = vmatpush.msra.mxu0 %v1309
    %1390 = vmatpush.msra.mxu0 %v1307
    %1391 = vmatpush.msra.mxu0 %v1305
    %1392 = vmatmul.f32.gmra.mxu0 %v962
    %v1393 = vpop.f32.mrf.mxu0
    %v1394 = vadd.f32 %v1372, %v1393
    %1395 = vmatmul.f32.gmra.mxu0 %v966
    %v1396 = vpop.f32.mrf.mxu0
    %v1397 = vadd.f32 %v1372, %v1396
    %1398 = vmatmul.f32.gmra.mxu0 %v970
    %v1399 = vpop.f32.mrf.mxu0
    %v1400 = vadd.f32 %v1372, %v1399
    %1401 = vmatmul.f32.gmra.mxu0 %v974
    %v1402 = vpop.f32.mrf.mxu0
    %v1403 = vadd.f32 %v1372, %v1402
    %1404 = vdwg.mxu0
    %1405 = vmatpush.msra.mxu0 %v1367
    %1406 = vmatpush.msra.mxu0 %v1365
    %1407 = vmatpush.msra.mxu0 %v1363
    %1408 = vmatpush.msra.mxu0 %v1361
    %1409 = vmatpush.msra.mxu0 %v1359
    %1410 = vmatpush.msra.mxu0 %v1357
    %1411 = vmatpush.msra.mxu0 %v1355
    %1412 = vmatpush.msra.mxu0 %v1353
    %1413 = vmatpush.msra.mxu0 %v1351
    %1414 = vmatpush.msra.mxu0 %v1349
    %1415 = vmatpush.msra.mxu0 %v1347
    %1416 = vmatpush.msra.mxu0 %v1345
    %1417 = vmatpush.msra.mxu0 %v1343
    %1418 = vmatpush.msra.mxu0 %v1341
    %1419 = vmatpush.msra.mxu0 %v1339
    %1420 = vmatpush.msra.mxu0 %v1337
    %1421 = vmatmul.f32.gmra.mxu0 %v963
    %v1422 = vpop.f32.mrf.mxu0
    %v1423 = vadd.f32 %v1394, %v1422
    %1424 = vmatmul.f32.gmra.mxu0 %v967
    %v1425 = vpop.f32.mrf.mxu0
    %v1426 = vadd.f32 %v1397, %v1425
    %1427 = vmatmul.f32.gmra.mxu0 %v971
    %v1428 = vpop.f32.mrf.mxu0
    %v1429 = vadd.f32 %v1400, %v1428
    %1430 = vmatmul.f32.gmra.mxu0 %v975
    %v1431 = vpop.f32.mrf.mxu0
    %v1432 = vadd.f32 %v1403, %v1431
    %1433 = vdwg.mxu0
    %1434 = vmatpush.msra.mxu0 %v1336
    %1435 = vmatpush.msra.mxu0 %v1334
    %1436 = vmatpush.msra.mxu0 %v1332
    %1437 = vmatpush.msra.mxu0 %v1330
    %1438 = vmatpush.msra.mxu0 %v1328
    %1439 = vmatpush.msra.mxu0 %v1326
    %1440 = vmatpush.msra.mxu0 %v1324
    %1441 = vmatpush.msra.mxu0 %v1322
    %1442 = vmatpush.msra.mxu0 %v1320
    %1443 = vmatpush.msra.mxu0 %v1318
    %1444 = vmatpush.msra.mxu0 %v1316
    %1445 = vmatpush.msra.mxu0 %v1314
    %1446 = vmatpush.msra.mxu0 %v1312
    %1447 = vmatpush.msra.mxu0 %v1310
    %1448 = vmatpush.msra.mxu0 %v1308
    %1449 = vmatpush.msra.mxu0 %v1306
    %1450 = vmatmul.f32.gmra.mxu0 %v962
    %v1451 = vpop.f32.mrf.mxu0
    %v1452 = vadd.f32 %v1373, %v1451
    %1453 = vmatmul.f32.gmra.mxu0 %v966
    %v1454 = vpop.f32.mrf.mxu0
    %v1455 = vadd.f32 %v1373, %v1454
    %1456 = vmatmul.f32.gmra.mxu0 %v970
    %v1457 = vpop.f32.mrf.mxu0
    %v1458 = vadd.f32 %v1373, %v1457
    %1459 = vmatmul.f32.gmra.mxu0 %v974
    %v1460 = vpop.f32.mrf.mxu0
    %v1461 = vadd.f32 %v1373, %v1460
    %1462 = vdwg.mxu0
    %1463 = vmatpush.msra.mxu0 %v1368
    %1464 = vmatpush.msra.mxu0 %v1366
    %1465 = vmatpush.msra.mxu0 %v1364
    %1466 = vmatpush.msra.mxu0 %v1362
    %1467 = vmatpush.msra.mxu0 %v1360
    %1468 = vmatpush.msra.mxu0 %v1358
    %1469 = vmatpush.msra.mxu0 %v1356
    %1470 = vmatpush.msra.mxu0 %v1354
    %1471 = vmatpush.msra.mxu0 %v1352
    %1472 = vmatpush.msra.mxu0 %v1350
    %1473 = vmatpush.msra.mxu0 %v1348
    %1474 = vmatpush.msra.mxu0 %v1346
    %1475 = vmatpush.msra.mxu0 %v1344
    %1476 = vmatpush.msra.mxu0 %v1342
    %1477 = vmatpush.msra.mxu0 %v1340
    %1478 = vmatpush.msra.mxu0 %v1338
    %1479 = vmatmul.f32.gmra.mxu0 %v963
    %v1480 = vpop.f32.mrf.mxu0
    %v1481 = vadd.f32 %v1452, %v1480
    %1482 = vmatmul.f32.gmra.mxu0 %v967
    %v1483 = vpop.f32.mrf.mxu0
    %v1484 = vadd.f32 %v1455, %v1483
    %1485 = vmatmul.f32.gmra.mxu0 %v971
    %v1486 = vpop.f32.mrf.mxu0
    %v1487 = vadd.f32 %v1458, %v1486
    %1488 = vmatmul.f32.gmra.mxu0 %v975
    %v1489 = vpop.f32.mrf.mxu0
    %v1490 = vadd.f32 %v1461, %v1489
    %1491 = vdwg.mxu0
    %vm1492 = vcmp.gt.f32.partialorder %v1423, 0.0
    %vm1493 = vcmp.gt.f32.partialorder %v1481, 0.0
    %vm1494 = vcmp.gt.f32.partialorder %v1426, 0.0
    %vm1495 = vcmp.gt.f32.partialorder %v1484, 0.0
    %vm1496 = vcmp.gt.f32.partialorder %v1429, 0.0
    %vm1497 = vcmp.gt.f32.partialorder %v1487, 0.0
    %vm1498 = vcmp.gt.f32.partialorder %v1432, 0.0
    %vm1499 = vcmp.gt.f32.partialorder %v1490, 0.0
    %v1500 = vmin.f32 %v1423, 0.0
    %v1501 = vmin.f32 %v1481, 0.0
    %v1502 = vmin.f32 %v1426, 0.0
    %v1503 = vmin.f32 %v1484, 0.0
    %v1504 = vmin.f32 %v1429, 0.0
    %v1505 = vmin.f32 %v1487, 0.0
    %v1506 = vmin.f32 %v1432, 0.0
    %v1507 = vmin.f32 %v1490, 0.0
    %v1508 = vmul.f32 %v1500, 1.442695
    %v1509 = vpow.pop %v1508
    %v1510 = vmul.f32 %v1501, 1.442695
    %v1511 = vpow.pop %v1510
    %v1512 = vmul.f32 %v1502, 1.442695
    %v1513 = vpow.pop %v1512
    %v1514 = vmul.f32 %v1503, 1.442695
    %v1515 = vpow.pop %v1514
    %v1516 = vmul.f32 %v1504, 1.442695
    %v1517 = vpow.pop %v1516
    %v1518 = vmul.f32 %v1505, 1.442695
    %v1519 = vpow.pop %v1518
    %v1520 = vmul.f32 %v1506, 1.442695
    %v1521 = vpow.pop %v1520
    %v1522 = vmul.f32 %v1507, 1.442695
    %v1523 = vpow.pop %v1522
    %v1524 = vsub.f32 %v1509, 1.0
    %v1525 = vsub.f32 %v1511, 1.0
    %v1526 = vsub.f32 %v1513, 1.0
    %v1527 = vsub.f32 %v1515, 1.0
    %v1528 = vsub.f32 %v1517, 1.0
    %v1529 = vsub.f32 %v1519, 1.0
    %v1530 = vsub.f32 %v1521, 1.0
    %v1531 = vsub.f32 %v1523, 1.0
    %v1532 = vsel %vm1492, %v1423, %v1524
    %v1533 = vsel %vm1493, %v1481, %v1525
    %v1534 = vsel %vm1494, %v1426, %v1526
    %v1535 = vsel %vm1495, %v1484, %v1527
    %v1536 = vsel %vm1496, %v1429, %v1528
    %v1537 = vsel %vm1497, %v1487, %v1529
    %v1538 = vsel %vm1498, %v1432, %v1530
    %v1539 = vsel %vm1499, %v1490, %v1531
    %s1540 = scalar_lea.vmem [#allocation8], 256
    %v1541 = vld [vmem:[%s1540] sm:$0xff]
    %v1542 = vld [vmem:[%s1540 + $0x8] sm:$0xff]
    %v1543 = vld [vmem:[%s1540 + $0x10] sm:$0xff]
    %v1544 = vld [vmem:[%s1540 + $0x18] sm:$0xff]
    %v1545 = vld [vmem:[%s1540 + $0x20] sm:$0xff]
    %v1546 = vld [vmem:[%s1540 + $0x28] sm:$0xff]
    %v1547 = vld [vmem:[%s1540 + $0x30] sm:$0xff]
    %v1548 = vld [vmem:[%s1540 + $0x38] sm:$0xff]
    %v1549 = vld [vmem:[%s1540 + $0x40] sm:$0xff]
    %v1550 = vld [vmem:[%s1540 + $0x48] sm:$0xff]
    %v1551 = vld [vmem:[%s1540 + $0x50] sm:$0xff]
    %v1552 = vld [vmem:[%s1540 + $0x58] sm:$0xff]
    %v1553 = vld [vmem:[%s1540 + $0x60] sm:$0xff]
    %v1554 = vld [vmem:[%s1540 + $0x68] sm:$0xff]
    %v1555 = vld [vmem:[%s1540 + $0x70] sm:$0xff]
    %v1556 = vld [vmem:[%s1540 + $0x78] sm:$0xff]
    %v1557 = vld [vmem:[%s1540 + $0x80] sm:$0xff]
    %v1558 = vld [vmem:[%s1540 + $0x88] sm:$0xff]
    %v1559 = vld [vmem:[%s1540 + $0x90] sm:$0xff]
    %v1560 = vld [vmem:[%s1540 + $0x98] sm:$0xff]
    %v1561 = vld [vmem:[%s1540 + $0xa0] sm:$0xff]
    %v1562 = vld [vmem:[%s1540 + $0xa8] sm:$0xff]
    %v1563 = vld [vmem:[%s1540 + $0xb0] sm:$0xff]
    %v1564 = vld [vmem:[%s1540 + $0xb8] sm:$0xff]
    %v1565 = vld [vmem:[%s1540 + $0xc0] sm:$0xff]
    %v1566 = vld [vmem:[%s1540 + $0xc8] sm:$0xff]
    %v1567 = vld [vmem:[%s1540 + $0xd0] sm:$0xff]
    %v1568 = vld [vmem:[%s1540 + $0xd8] sm:$0xff]
    %v1569 = vld [vmem:[%s1540 + $0xe0] sm:$0xff]
    %v1570 = vld [vmem:[%s1540 + $0xe8] sm:$0xff]
    %v1571 = vld [vmem:[%s1540 + $0xf0] sm:$0xff]
    %v1572 = vld [vmem:[%s1540 + $0xf8] sm:$0xff]
    %s1573 = scalar_lea.vmem %s10, 1
    %v1574 = vld [vmem:[%s1573] sm:$0x1]
    %v1576 = vperm.slane %v1574, 0
    %1578 = vmatpush.msra.mxu0 %v1556
    %1579 = vmatpush.msra.mxu0 %v1555
    %1580 = vmatpush.msra.mxu0 %v1554
    %1581 = vmatpush.msra.mxu0 %v1553
    %1582 = vmatpush.msra.mxu0 %v1552
    %1583 = vmatpush.msra.mxu0 %v1551
    %1584 = vmatpush.msra.mxu0 %v1550
    %1585 = vmatpush.msra.mxu0 %v1549
    %1586 = vmatpush.msra.mxu0 %v1548
    %1587 = vmatpush.msra.mxu0 %v1547
    %1588 = vmatpush.msra.mxu0 %v1546
    %1589 = vmatpush.msra.mxu0 %v1545
    %1590 = vmatpush.msra.mxu0 %v1544
    %1591 = vmatpush.msra.mxu0 %v1543
    %1592 = vmatpush.msra.mxu0 %v1542
    %1593 = vmatpush.msra.mxu0 %v1541
    %1594 = vmatmul.f32.gmra.mxu0 %v1532
    %v1595 = vpop.f32.mrf.mxu0
    %v1596 = vadd.f32 %v1576, %v1595
    %1597 = vmatmul.f32.gmra.mxu0 %v1534
    %v1598 = vpop.f32.mrf.mxu0
    %v1599 = vadd.f32 %v1576, %v1598
    %1600 = vmatmul.f32.gmra.mxu0 %v1536
    %v1601 = vpop.f32.mrf.mxu0
    %v1602 = vadd.f32 %v1576, %v1601
    %1603 = vmatmul.f32.gmra.mxu0 %v1538
    %v1604 = vpop.f32.mrf.mxu0
    %v1605 = vadd.f32 %v1576, %v1604
    %1606 = vdwg.mxu0
    %1607 = vmatpush.msra.mxu0 %v1572
    %1608 = vmatpush.msra.mxu0 %v1571
    %1609 = vmatpush.msra.mxu0 %v1570
    %1610 = vmatpush.msra.mxu0 %v1569
    %1611 = vmatpush.msra.mxu0 %v1568
    %1612 = vmatpush.msra.mxu0 %v1567
    %1613 = vmatpush.msra.mxu0 %v1566
    %1614 = vmatpush.msra.mxu0 %v1565
    %1615 = vmatpush.msra.mxu0 %v1564
    %1616 = vmatpush.msra.mxu0 %v1563
    %1617 = vmatpush.msra.mxu0 %v1562
    %1618 = vmatpush.msra.mxu0 %v1561
    %1619 = vmatpush.msra.mxu0 %v1560
    %1620 = vmatpush.msra.mxu0 %v1559
    %1621 = vmatpush.msra.mxu0 %v1558
    %1622 = vmatpush.msra.mxu0 %v1557
    %1623 = vmatmul.f32.gmra.mxu0 %v1533
    %v1624 = vpop.f32.mrf.mxu0
    %v1625 = vadd.f32 %v1596, %v1624
    %1626 = vmatmul.f32.gmra.mxu0 %v1535
    %v1627 = vpop.f32.mrf.mxu0
    %v1628 = vadd.f32 %v1599, %v1627
    %1629 = vmatmul.f32.gmra.mxu0 %v1537
    %v1630 = vpop.f32.mrf.mxu0
    %v1631 = vadd.f32 %v1602, %v1630
    %1632 = vmatmul.f32.gmra.mxu0 %v1539
    %v1633 = vpop.f32.mrf.mxu0
    %v1634 = vadd.f32 %v1605, %v1633
    %1635 = vdwg.mxu0
    %v1636 = vmin.f32 %v1293, %v1625
    %v1637 = vmin.f32 %v1296, %v1628
    %v1638 = vmin.f32 %v1299, %v1631
    %v1639 = vmin.f32 %v1302, %v1634
    %1640 = vst [vmem:[#allocation9] sm:$0xff] %v1636
    %1641 = vst [vmem:[#allocation9 + $0x8] sm:$0xff] %v1637
    %1642 = vst [vmem:[#allocation9 + $0x10] sm:$0xff] %v1638
    %1643 = vst [vmem:[#allocation9 + $0x18] sm:$0xff] %v1639
    // Predicated region
    $region65: #{tpu_custom_call.1} parent=1 // pred_check
      _
    $region66: #{tpu_custom_call.1} parent=1 // pred_check_branch
      %1645 = sbr.rel (0) target = $region68
    $region67: #{tpu_custom_call.1} parent=1 // pred_region
      %1647 = vsyncadd [#allocation5], 0
      %s1648 = sshll.u32 [#allocation9], 4
      %s1649 = int_to_ptr.vmem [resolvable:$true] %s1648
      %s1650 = sshll.u32 %s11, 4
      %s1651 = int_to_ptr.hbm [resolvable:$true] %s1650
      %1656 = dma.vmem_to_hbm [thread:$0]  %s1649, 512, %s1651, [#allocation5], 128, 128, 8
    $region68: #{tpu_custom_call.1} parent=1 // pred_fallthru
      _
    // Predicated region
    $region69: #{tpu_custom_call.1} parent=1 // pred_check
      _
    $region70: #{tpu_custom_call.1} parent=1 // pred_check_branch
      %1658 = sbr.rel (0) target = $region72
    $region71: #{tpu_custom_call.1} parent=1 // pred_region
      %1660 = dma.done [#allocation5], 512
    $region72: #{tpu_custom_call.1} parent=1 // pred_fallthru
      _
    %1661 = vsyncpa [#allocation4], 1
    %1662 = vsyncpa [#allocation7], 1
    %1663 = vsyncpa [#allocation5], 1

</llo_original>
